<compile_context>
chip_gen: v7x
topology: tpu7x:2x2x1
jax: 0.10.0
libtpu: 0.0.40
codegen_flags: <defaults>
</compile_context>

<pallas_src>
import jax
import jax.numpy as jnp
from jax.experimental import pallas as pl
from jax.experimental.pallas import tpu as pltpu


# -----------------------------------------------------------------------------
# Fused kernel factory.
# Kernel args: x2d, h0, enc_w, enc_b, [wih_p, whh_p, bx, bh_p] * num_layers,
#              dec_w, dec_b, | out2d, hfin, | gx_scratch, seq_scratch
# -----------------------------------------------------------------------------
def _make_fused_gru_unit_kernel(num_layers, L, B, H):
    n_in = 4 + 4 * num_layers + 2

    def kernel(*refs):
        in_refs = refs[:n_in]
        out_ref, hfin_ref = refs[n_in], refs[n_in + 1]
        gx_ref, seq_ref = refs[n_in + 2], refs[n_in + 3]

        x_ref, h0_ref, enc_w_ref, enc_b_ref = in_refs[0:4]
        dec_w_ref, dec_b_ref = in_refs[4 + 4 * num_layers:n_in]

        f32 = jnp.float32

        # ---- encoder Linear over the whole (L*B, F) slab: one MXU matmul ----
        act = (
            jnp.dot(x_ref[...].astype(f32), enc_w_ref[...].astype(f32),
                    preferred_element_type=f32)
            + enc_b_ref[...].astype(f32)
        )                                                       # (L*B, In)

        # ---- stacked GRU layers ---------------------------------------------
        for l in range(num_layers):
            wih_ref, whh_ref, bx_ref, bh_ref = in_refs[4 + 4 * l: 4 + 4 * (l + 1)]
            whh = whh_ref[...].astype(f32)                      # (H, 3H)
            bh = bh_ref[...].astype(f32)                        # (1, 3H) = [0 | 0 | b_hn]

            # Hoisted input-side projections for the WHOLE sequence:
            # one (L*B, Din) @ (Din, 3H) matmul instead of 3 tiny matmuls per step.
            gx_ref[...] = (
                jnp.dot(act, wih_ref[...].astype(f32), preferred_element_type=f32)
                + bx_ref[...].astype(f32)
            )                                                   # (L*B, 3H)

            h = h0_ref[l].astype(f32)                           # (B, H)

            # Serial recurrence: fully unrolled static loop; h lives in vregs.
            for t in range(L):
                gx_t = gx_ref[pl.ds(t * B, B), :]               # (B, 3H), static slice
                gh = jnp.dot(h, whh, preferred_element_type=f32) + bh   # (B, 3H)
                rz = jax.nn.sigmoid(gx_t[:, : 2 * H] + gh[:, : 2 * H])
                r = rz[:, :H]
                z = rz[:, H:]
                n = jnp.tanh(gx_t[:, 2 * H:] + r * gh[:, 2 * H:])
                h = n + z * (h - n)                              # == (1-z)*n + z*h
                seq_ref[pl.ds(t * B, B), :] = h

            hfin_ref[l] = h.astype(hfin_ref.dtype)
            act = seq_ref[...]                                   # (L*B, H)

        # ---- decoder Linear over the whole slab ------------------------------
        dec = (
            jnp.dot(act, dec_w_ref[...].astype(f32), preferred_element_type=f32)
            + dec_b_ref[...].astype(f32)
        )
        out_ref[...] = dec.astype(out_ref.dtype)

    return kernel


# -----------------------------------------------------------------------------
# Full GRUUnit forward (single pallas_call).
# -----------------------------------------------------------------------------
def gru_unit_forward(params, x, prev_hidden):
    L, B, F = x.shape
    num_layers, _, H = prev_hidden.shape
    dtype = x.dtype

    args = [x.reshape(L * B, F), prev_hidden,
            params["enc_w_t"], params["enc_b_row"]]
    for lp in params["gru_layers"]:
        args += [lp["wih_p"], lp["whh_p"], lp["bx"], lp["bh_p"]]
    args += [params["dec_w_t"], params["dec_b_row"]]

    kernel = _make_fused_gru_unit_kernel(num_layers, L, B, H)
    vmem = pl.BlockSpec(memory_space=pltpu.MemorySpace.VMEM)

    out2d, cur_hidden = pl.pallas_call(
        kernel,
        out_shape=(
            jax.ShapeDtypeStruct((L * B, F), dtype),
            jax.ShapeDtypeStruct((num_layers, B, H), dtype),
        ),
        in_specs=[vmem] * len(args),
        out_specs=(vmem, vmem),
        scratch_shapes=[
            pltpu.VMEM((L * B, 3 * H), jnp.float32),   # hoisted input-side gate slab
            pltpu.VMEM((L * B, H), jnp.float32),       # current layer output sequence
        ],
    )(*args)

    return out2d.reshape(L, B, F), cur_hidden


# -----------------------------------------------------------------------------
# Deterministic parameter construction (synthetic, PyTorch layouts kept for the
# reference; packed versions prepared for the kernel).
# -----------------------------------------------------------------------------
def make_params(key, features, input_size, hidden_size, num_layers):
    keys = jax.random.split(key, 4 + 4 * num_layers)   # 2 enc + 4/layer + 2 dec
    k = iter(keys)

    def init(shape, kk, scale=0.1):
        return (scale * jax.random.normal(kk, shape)).astype(jnp.float32)

    H = hidden_size

    enc_w = init((input_size, features), next(k))       # PyTorch Linear weight (out, in)
    enc_b = init((input_size,), next(k))

    params = {
        "enc_w": enc_w, "enc_b": enc_b,
        "enc_w_t": enc_w.T,                             # (F, In) for kernel matmul
        "enc_b_row": enc_b.reshape(1, -1),
        "gru_layers": [],
    }

    for layer in range(num_layers):
        din = input_size if layer == 0 else hidden_size
        w_ih = init((3 * H, din), next(k))              # PyTorch GRU layout (3H, Din), gates [r|z|n]
        w_hh = init((3 * H, H), next(k))
        b_ih = init((3 * H,), next(k))
        b_hh = init((3 * H,), next(k))

        # packed kernel weights: (Din, 3H) / (H, 3H)
        bx = jnp.concatenate(
            [b_ih[0:H] + b_hh[0:H],           # r: b_ir + b_hr (foldable)
             b_ih[H:2 * H] + b_hh[H:2 * H],   # z: b_iz + b_hz (foldable)
             b_ih[2 * H:3 * H]],              # n: b_in only
            axis=0).reshape(1, 3 * H)
        bh_p = jnp.concatenate(
            [jnp.zeros((2 * H,), jnp.float32), b_hh[2 * H:3 * H]],
            axis=0).reshape(1, 3 * H)         # [0 | 0 | b_hn] (added before r-multiply)

        params["gru_layers"].append({
            "layer": layer,
            # raw PyTorch-layout weights (used by the pure-JAX reference)
            "w_ih": w_ih, "w_hh": w_hh, "b_ih": b_ih, "b_hh": b_hh,
            # packed kernel weights
            "wih_p": w_ih.T, "whh_p": w_hh.T, "bx": bx, "bh_p": bh_p,
        })

    dec_w = init((features, hidden_size), next(k))      # PyTorch Linear weight (out, in)
    dec_b = init((features,), next(k))
    params["dec_w"] = dec_w
    params["dec_b"] = dec_b
    params["dec_w_t"] = dec_w.T                         # (H, F)
    params["dec_b_row"] = dec_b.reshape(1, -1)
    return params


# -----------------------------------------------------------------------------
# Pure-JAX reference using the raw PyTorch-layout weights (also validates the
# weight packing used by the kernel).
# -----------------------------------------------------------------------------
def gru_unit_reference(params, x, prev_hidden):
    L, B, F = x.shape
    out = x.reshape(L * B, F) @ params["enc_w"].T + params["enc_b"]
    out = out.reshape(L, B, -1)

    cur_hiddens = []
    for lp in params["gru_layers"]:
        w_ih, w_hh, b_ih, b_hh = lp["w_ih"], lp["w_hh"], lp["b_ih"], lp["b_hh"]

        def cell(h, xt, w_ih=w_ih, w_hh=w_hh, b_ih=b_ih, b_hh=b_hh):
            gi = xt @ w_ih.T + b_ih
            gh = h @ w_hh.T + b_hh
            i_r, i_z, i_n = jnp.split(gi, 3, axis=-1)
            h_r, h_z, h_n = jnp.split(gh, 3, axis=-1)
            r = jax.nn.sigmoid(i_r + h_r)
            z = jax.nn.sigmoid(i_z + h_z)
            n = jnp.tanh(i_n + r * h_n)
            h_new = (1.0 - z) * n + z * h
            return h_new, h_new

        h_fin, seq = jax.lax.scan(cell, prev_hidden[lp["layer"]], out)
        out = seq
        cur_hiddens.append(h_fin)
    cur_hidden = jnp.stack(cur_hiddens, axis=0)

    H = out.shape[-1]
    dec = out.reshape(L * B, H) @ params["dec_w"].T + params["dec_b"]
    return dec.reshape(L, B, -1), cur_hidden


if __name__ == "__main__":
    # Small shapes consistent with the module's forward.
    L, B = 8, 2
    features, input_size, hidden_size, num_layers = 4, 16, 32, 2

    key = jax.random.PRNGKey(0)
    kx, kh, kp = jax.random.split(key, 3)

    x = jax.random.normal(kx, (L, B, features), dtype=jnp.float32)
    prev_hidden = jax.random.normal(kh, (num_layers, B, hidden_size), dtype=jnp.float32)
    params = make_params(kp, features, input_size, hidden_size, num_layers)

    out, cur_hidden = gru_unit_forward(params, x, prev_hidden)
    out = jax.block_until_ready(out)
    cur_hidden = jax.block_until_ready(cur_hidden)

    ref_out, ref_hidden = gru_unit_reference(params, x, prev_hidden)

    assert out.shape == (L, B, features), out.shape
    assert cur_hidden.shape == (num_layers, B, hidden_size), cur_hidden.shape
    assert jnp.allclose(out, ref_out, atol=1e-3, rtol=1e-3)
    assert jnp.allclose(cur_hidden, ref_hidden, atol=1e-3, rtol=1e-3)

    print("KERNEL_OK")
</pallas_src>

<mosaic_0001>
module attributes {stable_mosaic.version = 11 : i64} {
  func.func @kernel(%arg0: memref<16x4xf32, #tpu.memory_space<vmem>>, %arg1: memref<2x2x32xf32, #tpu.memory_space<vmem>>, %arg2: memref<4x16xf32, #tpu.memory_space<vmem>>, %arg3: memref<1x16xf32, #tpu.memory_space<vmem>>, %arg4: memref<16x96xf32, #tpu.memory_space<vmem>>, %arg5: memref<32x96xf32, #tpu.memory_space<vmem>>, %arg6: memref<1x96xf32, #tpu.memory_space<vmem>>, %arg7: memref<1x96xf32, #tpu.memory_space<vmem>>, %arg8: memref<32x96xf32, #tpu.memory_space<vmem>>, %arg9: memref<32x96xf32, #tpu.memory_space<vmem>>, %arg10: memref<1x96xf32, #tpu.memory_space<vmem>>, %arg11: memref<1x96xf32, #tpu.memory_space<vmem>>, %arg12: memref<32x4xf32, #tpu.memory_space<vmem>>, %arg13: memref<1x4xf32, #tpu.memory_space<vmem>>, %arg14: memref<16x4xf32, #tpu.memory_space<vmem>>, %arg15: memref<2x2x32xf32, #tpu.memory_space<vmem>>, %arg16: memref<16x96xf32, #tpu.memory_space<vmem>>, %arg17: memref<16x32xf32, #tpu.memory_space<vmem>>) attributes {dimension_semantics = [], scalar_prefetch = 0 : i64, scratch_operands = 2 : i64, tpu.core_type = #tpu.core_type<tc>} {
    %c0 = arith.constant 0 : index
    %c0_0 = arith.constant 0 : index
    %0 = vector.load %arg0[%c0, %c0_0] : memref<16x4xf32, #tpu.memory_space<vmem>>, vector<16x4xf32>
    %c0_1 = arith.constant 0 : index
    %c0_2 = arith.constant 0 : index
    %1 = vector.load %arg2[%c0_1, %c0_2] : memref<4x16xf32, #tpu.memory_space<vmem>>, vector<4x16xf32>
    %cst = arith.constant dense<0.000000e+00> : vector<16x16xf32>
    %2 = tpu.matmul %0, %1, %cst {dimension_numbers = #tpu.dot_dimension_numbers<[1], [0], [0], [1], [0, 0, 1, 1], [], []>} : vector<16x4xf32>, vector<4x16xf32>, vector<16x16xf32> -> vector<16x16xf32>
    %c0_3 = arith.constant 0 : index
    %c0_4 = arith.constant 0 : index
    %3 = vector.load %arg3[%c0_3, %c0_4] : memref<1x16xf32, #tpu.memory_space<vmem>>, vector<1x16xf32>
    %4 = vector.broadcast %3 : vector<1x16xf32> to vector<16x16xf32>
    %5 = arith.addf %2, %4 : vector<16x16xf32>
    %c0_5 = arith.constant 0 : index
    %c0_6 = arith.constant 0 : index
    %6 = vector.load %arg5[%c0_5, %c0_6] : memref<32x96xf32, #tpu.memory_space<vmem>>, vector<32x96xf32>
    %c0_7 = arith.constant 0 : index
    %c0_8 = arith.constant 0 : index
    %7 = vector.load %arg7[%c0_7, %c0_8] : memref<1x96xf32, #tpu.memory_space<vmem>>, vector<1x96xf32>
    %c0_9 = arith.constant 0 : index
    %c0_10 = arith.constant 0 : index
    %8 = vector.load %arg4[%c0_9, %c0_10] : memref<16x96xf32, #tpu.memory_space<vmem>>, vector<16x96xf32>
    %cst_11 = arith.constant dense<0.000000e+00> : vector<16x96xf32>
    %9 = tpu.matmul %5, %8, %cst_11 {dimension_numbers = #tpu.dot_dimension_numbers<[1], [0], [0], [1], [0, 0, 1, 1], [], []>} : vector<16x16xf32>, vector<16x96xf32>, vector<16x96xf32> -> vector<16x96xf32>
    %c0_12 = arith.constant 0 : index
    %c0_13 = arith.constant 0 : index
    %10 = vector.load %arg6[%c0_12, %c0_13] : memref<1x96xf32, #tpu.memory_space<vmem>>, vector<1x96xf32>
    %11 = vector.broadcast %10 : vector<1x96xf32> to vector<16x96xf32>
    %12 = arith.addf %9, %11 : vector<16x96xf32>
    %c0_14 = arith.constant 0 : index
    %c0_15 = arith.constant 0 : index
    %13 = vector.load %arg16[%c0_14, %c0_15] : memref<16x96xf32, #tpu.memory_space<vmem>>, vector<16x96xf32>
    tpu.vector_store %arg16[%c0_14, %c0_15], %12 {strides = array<i32>} : memref<16x96xf32, #tpu.memory_space<vmem>>, vector<16x96xf32>,
    %c0_16 = arith.constant 0 : index
    %c0_17 = arith.constant 0 : index
    %c0_18 = arith.constant 0 : index
    %14 = vector.load %arg1[%c0_16, %c0_17, %c0_18] : memref<2x2x32xf32, #tpu.memory_space<vmem>>, vector<1x2x32xf32>
    %15 = vector.shape_cast %14 : vector<1x2x32xf32> to vector<2x32xf32>
    %c0_19 = arith.constant 0 : index
    %c0_20 = arith.constant 0 : index
    %16 = vector.load %arg16[%c0_19, %c0_20] : memref<16x96xf32, #tpu.memory_space<vmem>>, vector<2x96xf32>
    %cst_21 = arith.constant dense<0.000000e+00> : vector<2x96xf32>
    %17 = tpu.matmul %15, %6, %cst_21 {dimension_numbers = #tpu.dot_dimension_numbers<[1], [0], [0], [1], [0, 0, 1, 1], [], []>} : vector<2x32xf32>, vector<32x96xf32>, vector<2x96xf32> -> vector<2x96xf32>
    %18 = vector.broadcast %7 : vector<1x96xf32> to vector<2x96xf32>
    %19 = arith.addf %17, %18 : vector<2x96xf32>
    %20 = vector.extract_strided_slice %16 {offsets = [0, 0], sizes = [2, 64], strides = [1, 1]} : vector<2x96xf32> to vector<2x64xf32>
    %21 = vector.extract_strided_slice %19 {offsets = [0, 0], sizes = [2, 64], strides = [1, 1]} : vector<2x96xf32> to vector<2x64xf32>
    %22 = arith.addf %20, %21 : vector<2x64xf32>
    %23 = arith.negf %22 : vector<2x64xf32>
    %24 = math.exp %23 : vector<2x64xf32>
    %cst_22 = arith.constant 1.000000e+00 : f32
    %25 = vector.broadcast %cst_22 : f32 to vector<2x64xf32>
    %26 = arith.addf %25, %24 : vector<2x64xf32>
    %27 = arith.divf %25, %26 : vector<2x64xf32>
    %28 = vector.extract_strided_slice %27 {offsets = [0, 0], sizes = [2, 32], strides = [1, 1]} : vector<2x64xf32> to vector<2x32xf32>
    %29 = vector.extract_strided_slice %27 {offsets = [0, 32], sizes = [2, 32], strides = [1, 1]} : vector<2x64xf32> to vector<2x32xf32>
    %30 = vector.extract_strided_slice %16 {offsets = [0, 64], sizes = [2, 32], strides = [1, 1]} : vector<2x96xf32> to vector<2x32xf32>
    %31 = vector.extract_strided_slice %19 {offsets = [0, 64], sizes = [2, 32], strides = [1, 1]} : vector<2x96xf32> to vector<2x32xf32>
    %32 = arith.mulf %28, %31 : vector<2x32xf32>
    %33 = arith.addf %30, %32 : vector<2x32xf32>
    %34 = math.tanh %33 : vector<2x32xf32>
    %35 = arith.subf %15, %34 : vector<2x32xf32>
    %36 = arith.mulf %29, %35 : vector<2x32xf32>
    %37 = arith.addf %34, %36 : vector<2x32xf32>
    %c0_23 = arith.constant 0 : index
    %c0_24 = arith.constant 0 : index
    %38 = vector.load %arg17[%c0_23, %c0_24] : memref<16x32xf32, #tpu.memory_space<vmem>>, vector<2x32xf32>
    tpu.vector_store %arg17[%c0_23, %c0_24], %37 {strides = array<i32>} : memref<16x32xf32, #tpu.memory_space<vmem>>, vector<2x32xf32>,
    %c2 = arith.constant 2 : index
    %c0_25 = arith.constant 0 : index
    %39 = vector.load %arg16[%c2, %c0_25] : memref<16x96xf32, #tpu.memory_space<vmem>>, vector<2x96xf32>
    %cst_26 = arith.constant dense<0.000000e+00> : vector<2x96xf32>
    %40 = tpu.matmul %37, %6, %cst_26 {dimension_numbers = #tpu.dot_dimension_numbers<[1], [0], [0], [1], [0, 0, 1, 1], [], []>} : vector<2x32xf32>, vector<32x96xf32>, vector<2x96xf32> -> vector<2x96xf32>
    %41 = vector.broadcast %7 : vector<1x96xf32> to vector<2x96xf32>
    %42 = arith.addf %40, %41 : vector<2x96xf32>
    %43 = vector.extract_strided_slice %39 {offsets = [0, 0], sizes = [2, 64], strides = [1, 1]} : vector<2x96xf32> to vector<2x64xf32>
    %44 = vector.extract_strided_slice %42 {offsets = [0, 0], sizes = [2, 64], strides = [1, 1]} : vector<2x96xf32> to vector<2x64xf32>
    %45 = arith.addf %43, %44 : vector<2x64xf32>
    %46 = arith.negf %45 : vector<2x64xf32>
    %47 = math.exp %46 : vector<2x64xf32>
    %cst_27 = arith.constant 1.000000e+00 : f32
    %48 = vector.broadcast %cst_27 : f32 to vector<2x64xf32>
    %49 = arith.addf %48, %47 : vector<2x64xf32>
    %50 = arith.divf %48, %49 : vector<2x64xf32>
    %51 = vector.extract_strided_slice %50 {offsets = [0, 0], sizes = [2, 32], strides = [1, 1]} : vector<2x64xf32> to vector<2x32xf32>
    %52 = vector.extract_strided_slice %50 {offsets = [0, 32], sizes = [2, 32], strides = [1, 1]} : vector<2x64xf32> to vector<2x32xf32>
    %53 = vector.extract_strided_slice %39 {offsets = [0, 64], sizes = [2, 32], strides = [1, 1]} : vector<2x96xf32> to vector<2x32xf32>
    %54 = vector.extract_strided_slice %42 {offsets = [0, 64], sizes = [2, 32], strides = [1, 1]} : vector<2x96xf32> to vector<2x32xf32>
    %55 = arith.mulf %51, %54 : vector<2x32xf32>
    %56 = arith.addf %53, %55 : vector<2x32xf32>
    %57 = math.tanh %56 : vector<2x32xf32>
    %58 = arith.subf %37, %57 : vector<2x32xf32>
    %59 = arith.mulf %52, %58 : vector<2x32xf32>
    %60 = arith.addf %57, %59 : vector<2x32xf32>
    %c2_28 = arith.constant 2 : index
    %c0_29 = arith.constant 0 : index
    %61 = vector.load %arg17[%c2_28, %c0_29] : memref<16x32xf32, #tpu.memory_space<vmem>>, vector<2x32xf32>
    tpu.vector_store %arg17[%c2_28, %c0_29], %60 {strides = array<i32>} : memref<16x32xf32, #tpu.memory_space<vmem>>, vector<2x32xf32>,
    %c4 = arith.constant 4 : index
    %c0_30 = arith.constant 0 : index
    %62 = vector.load %arg16[%c4, %c0_30] : memref<16x96xf32, #tpu.memory_space<vmem>>, vector<2x96xf32>
    %cst_31 = arith.constant dense<0.000000e+00> : vector<2x96xf32>
    %63 = tpu.matmul %60, %6, %cst_31 {dimension_numbers = #tpu.dot_dimension_numbers<[1], [0], [0], [1], [0, 0, 1, 1], [], []>} : vector<2x32xf32>, vector<32x96xf32>, vector<2x96xf32> -> vector<2x96xf32>
    %64 = vector.broadcast %7 : vector<1x96xf32> to vector<2x96xf32>
    %65 = arith.addf %63, %64 : vector<2x96xf32>
    %66 = vector.extract_strided_slice %62 {offsets = [0, 0], sizes = [2, 64], strides = [1, 1]} : vector<2x96xf32> to vector<2x64xf32>
    %67 = vector.extract_strided_slice %65 {offsets = [0, 0], sizes = [2, 64], strides = [1, 1]} : vector<2x96xf32> to vector<2x64xf32>
    %68 = arith.addf %66, %67 : vector<2x64xf32>
    %69 = arith.negf %68 : vector<2x64xf32>
    %70 = math.exp %69 : vector<2x64xf32>
    %cst_32 = arith.constant 1.000000e+00 : f32
    %71 = vector.broadcast %cst_32 : f32 to vector<2x64xf32>
    %72 = arith.addf %71, %70 : vector<2x64xf32>
    %73 = arith.divf %71, %72 : vector<2x64xf32>
    %74 = vector.extract_strided_slice %73 {offsets = [0, 0], sizes = [2, 32], strides = [1, 1]} : vector<2x64xf32> to vector<2x32xf32>
    %75 = vector.extract_strided_slice %73 {offsets = [0, 32], sizes = [2, 32], strides = [1, 1]} : vector<2x64xf32> to vector<2x32xf32>
    %76 = vector.extract_strided_slice %62 {offsets = [0, 64], sizes = [2, 32], strides = [1, 1]} : vector<2x96xf32> to vector<2x32xf32>
    %77 = vector.extract_strided_slice %65 {offsets = [0, 64], sizes = [2, 32], strides = [1, 1]} : vector<2x96xf32> to vector<2x32xf32>
    %78 = arith.mulf %74, %77 : vector<2x32xf32>
    %79 = arith.addf %76, %78 : vector<2x32xf32>
    %80 = math.tanh %79 : vector<2x32xf32>
    %81 = arith.subf %60, %80 : vector<2x32xf32>
    %82 = arith.mulf %75, %81 : vector<2x32xf32>
    %83 = arith.addf %80, %82 : vector<2x32xf32>
    %c4_33 = arith.constant 4 : index
    %c0_34 = arith.constant 0 : index
    %84 = vector.load %arg17[%c4_33, %c0_34] : memref<16x32xf32, #tpu.memory_space<vmem>>, vector<2x32xf32>
    tpu.vector_store %arg17[%c4_33, %c0_34], %83 {strides = array<i32>} : memref<16x32xf32, #tpu.memory_space<vmem>>, vector<2x32xf32>,
    %c6 = arith.constant 6 : index
    %c0_35 = arith.constant 0 : index
    %85 = vector.load %arg16[%c6, %c0_35] : memref<16x96xf32, #tpu.memory_space<vmem>>, vector<2x96xf32>
    %cst_36 = arith.constant dense<0.000000e+00> : vector<2x96xf32>
    %86 = tpu.matmul %83, %6, %cst_36 {dimension_numbers = #tpu.dot_dimension_numbers<[1], [0], [0], [1], [0, 0, 1, 1], [], []>} : vector<2x32xf32>, vector<32x96xf32>, vector<2x96xf32> -> vector<2x96xf32>
    %87 = vector.broadcast %7 : vector<1x96xf32> to vector<2x96xf32>
    %88 = arith.addf %86, %87 : vector<2x96xf32>
    %89 = vector.extract_strided_slice %85 {offsets = [0, 0], sizes = [2, 64], strides = [1, 1]} : vector<2x96xf32> to vector<2x64xf32>
    %90 = vector.extract_strided_slice %88 {offsets = [0, 0], sizes = [2, 64], strides = [1, 1]} : vector<2x96xf32> to vector<2x64xf32>
    %91 = arith.addf %89, %90 : vector<2x64xf32>
    %92 = arith.negf %91 : vector<2x64xf32>
    %93 = math.exp %92 : vector<2x64xf32>
    %cst_37 = arith.constant 1.000000e+00 : f32
    %94 = vector.broadcast %cst_37 : f32 to vector<2x64xf32>
    %95 = arith.addf %94, %93 : vector<2x64xf32>
    %96 = arith.divf %94, %95 : vector<2x64xf32>
    %97 = vector.extract_strided_slice %96 {offsets = [0, 0], sizes = [2, 32], strides = [1, 1]} : vector<2x64xf32> to vector<2x32xf32>
    %98 = vector.extract_strided_slice %96 {offsets = [0, 32], sizes = [2, 32], strides = [1, 1]} : vector<2x64xf32> to vector<2x32xf32>
    %99 = vector.extract_strided_slice %85 {offsets = [0, 64], sizes = [2, 32], strides = [1, 1]} : vector<2x96xf32> to vector<2x32xf32>
    %100 = vector.extract_strided_slice %88 {offsets = [0, 64], sizes = [2, 32], strides = [1, 1]} : vector<2x96xf32> to vector<2x32xf32>
    %101 = arith.mulf %97, %100 : vector<2x32xf32>
    %102 = arith.addf %99, %101 : vector<2x32xf32>
    %103 = math.tanh %102 : vector<2x32xf32>
    %104 = arith.subf %83, %103 : vector<2x32xf32>
    %105 = arith.mulf %98, %104 : vector<2x32xf32>
    %106 = arith.addf %103, %105 : vector<2x32xf32>
    %c6_38 = arith.constant 6 : index
    %c0_39 = arith.constant 0 : index
    %107 = vector.load %arg17[%c6_38, %c0_39] : memref<16x32xf32, #tpu.memory_space<vmem>>, vector<2x32xf32>
    tpu.vector_store %arg17[%c6_38, %c0_39], %106 {strides = array<i32>} : memref<16x32xf32, #tpu.memory_space<vmem>>, vector<2x32xf32>,
    %c8 = arith.constant 8 : index
    %c0_40 = arith.constant 0 : index
    %108 = vector.load %arg16[%c8, %c0_40] : memref<16x96xf32, #tpu.memory_space<vmem>>, vector<2x96xf32>
    %cst_41 = arith.constant dense<0.000000e+00> : vector<2x96xf32>
    %109 = tpu.matmul %106, %6, %cst_41 {dimension_numbers = #tpu.dot_dimension_numbers<[1], [0], [0], [1], [0, 0, 1, 1], [], []>} : vector<2x32xf32>, vector<32x96xf32>, vector<2x96xf32> -> vector<2x96xf32>
    %110 = vector.broadcast %7 : vector<1x96xf32> to vector<2x96xf32>
    %111 = arith.addf %109, %110 : vector<2x96xf32>
    %112 = vector.extract_strided_slice %108 {offsets = [0, 0], sizes = [2, 64], strides = [1, 1]} : vector<2x96xf32> to vector<2x64xf32>
    %113 = vector.extract_strided_slice %111 {offsets = [0, 0], sizes = [2, 64], strides = [1, 1]} : vector<2x96xf32> to vector<2x64xf32>
    %114 = arith.addf %112, %113 : vector<2x64xf32>
    %115 = arith.negf %114 : vector<2x64xf32>
    %116 = math.exp %115 : vector<2x64xf32>
    %cst_42 = arith.constant 1.000000e+00 : f32
    %117 = vector.broadcast %cst_42 : f32 to vector<2x64xf32>
    %118 = arith.addf %117, %116 : vector<2x64xf32>
    %119 = arith.divf %117, %118 : vector<2x64xf32>
    %120 = vector.extract_strided_slice %119 {offsets = [0, 0], sizes = [2, 32], strides = [1, 1]} : vector<2x64xf32> to vector<2x32xf32>
    %121 = vector.extract_strided_slice %119 {offsets = [0, 32], sizes = [2, 32], strides = [1, 1]} : vector<2x64xf32> to vector<2x32xf32>
    %122 = vector.extract_strided_slice %108 {offsets = [0, 64], sizes = [2, 32], strides = [1, 1]} : vector<2x96xf32> to vector<2x32xf32>
    %123 = vector.extract_strided_slice %111 {offsets = [0, 64], sizes = [2, 32], strides = [1, 1]} : vector<2x96xf32> to vector<2x32xf32>
    %124 = arith.mulf %120, %123 : vector<2x32xf32>
    %125 = arith.addf %122, %124 : vector<2x32xf32>
    %126 = math.tanh %125 : vector<2x32xf32>
    %127 = arith.subf %106, %126 : vector<2x32xf32>
    %128 = arith.mulf %121, %127 : vector<2x32xf32>
    %129 = arith.addf %126, %128 : vector<2x32xf32>
    %c8_43 = arith.constant 8 : index
    %c0_44 = arith.constant 0 : index
    %130 = vector.load %arg17[%c8_43, %c0_44] : memref<16x32xf32, #tpu.memory_space<vmem>>, vector<2x32xf32>
    tpu.vector_store %arg17[%c8_43, %c0_44], %129 {strides = array<i32>} : memref<16x32xf32, #tpu.memory_space<vmem>>, vector<2x32xf32>,
    %c10 = arith.constant 10 : index
    %c0_45 = arith.constant 0 : index
    %131 = vector.load %arg16[%c10, %c0_45] : memref<16x96xf32, #tpu.memory_space<vmem>>, vector<2x96xf32>
    %cst_46 = arith.constant dense<0.000000e+00> : vector<2x96xf32>
    %132 = tpu.matmul %129, %6, %cst_46 {dimension_numbers = #tpu.dot_dimension_numbers<[1], [0], [0], [1], [0, 0, 1, 1], [], []>} : vector<2x32xf32>, vector<32x96xf32>, vector<2x96xf32> -> vector<2x96xf32>
    %133 = vector.broadcast %7 : vector<1x96xf32> to vector<2x96xf32>
    %134 = arith.addf %132, %133 : vector<2x96xf32>
    %135 = vector.extract_strided_slice %131 {offsets = [0, 0], sizes = [2, 64], strides = [1, 1]} : vector<2x96xf32> to vector<2x64xf32>
    %136 = vector.extract_strided_slice %134 {offsets = [0, 0], sizes = [2, 64], strides = [1, 1]} : vector<2x96xf32> to vector<2x64xf32>
    %137 = arith.addf %135, %136 : vector<2x64xf32>
    %138 = arith.negf %137 : vector<2x64xf32>
    %139 = math.exp %138 : vector<2x64xf32>
    %cst_47 = arith.constant 1.000000e+00 : f32
    %140 = vector.broadcast %cst_47 : f32 to vector<2x64xf32>
    %141 = arith.addf %140, %139 : vector<2x64xf32>
    %142 = arith.divf %140, %141 : vector<2x64xf32>
    %143 = vector.extract_strided_slice %142 {offsets = [0, 0], sizes = [2, 32], strides = [1, 1]} : vector<2x64xf32> to vector<2x32xf32>
    %144 = vector.extract_strided_slice %142 {offsets = [0, 32], sizes = [2, 32], strides = [1, 1]} : vector<2x64xf32> to vector<2x32xf32>
    %145 = vector.extract_strided_slice %131 {offsets = [0, 64], sizes = [2, 32], strides = [1, 1]} : vector<2x96xf32> to vector<2x32xf32>
    %146 = vector.extract_strided_slice %134 {offsets = [0, 64], sizes = [2, 32], strides = [1, 1]} : vector<2x96xf32> to vector<2x32xf32>
    %147 = arith.mulf %143, %146 : vector<2x32xf32>
    %148 = arith.addf %145, %147 : vector<2x32xf32>
    %149 = math.tanh %148 : vector<2x32xf32>
    %150 = arith.subf %129, %149 : vector<2x32xf32>
    %151 = arith.mulf %144, %150 : vector<2x32xf32>
    %152 = arith.addf %149, %151 : vector<2x32xf32>
    %c10_48 = arith.constant 10 : index
    %c0_49 = arith.constant 0 : index
    %153 = vector.load %arg17[%c10_48, %c0_49] : memref<16x32xf32, #tpu.memory_space<vmem>>, vector<2x32xf32>
    tpu.vector_store %arg17[%c10_48, %c0_49], %152 {strides = array<i32>} : memref<16x32xf32, #tpu.memory_space<vmem>>, vector<2x32xf32>,
    %c12 = arith.constant 12 : index
    %c0_50 = arith.constant 0 : index
    %154 = vector.load %arg16[%c12, %c0_50] : memref<16x96xf32, #tpu.memory_space<vmem>>, vector<2x96xf32>
    %cst_51 = arith.constant dense<0.000000e+00> : vector<2x96xf32>
    %155 = tpu.matmul %152, %6, %cst_51 {dimension_numbers = #tpu.dot_dimension_numbers<[1], [0], [0], [1], [0, 0, 1, 1], [], []>} : vector<2x32xf32>, vector<32x96xf32>, vector<2x96xf32> -> vector<2x96xf32>
    %156 = vector.broadcast %7 : vector<1x96xf32> to vector<2x96xf32>
    %157 = arith.addf %155, %156 : vector<2x96xf32>
    %158 = vector.extract_strided_slice %154 {offsets = [0, 0], sizes = [2, 64], strides = [1, 1]} : vector<2x96xf32> to vector<2x64xf32>
    %159 = vector.extract_strided_slice %157 {offsets = [0, 0], sizes = [2, 64], strides = [1, 1]} : vector<2x96xf32> to vector<2x64xf32>
    %160 = arith.addf %158, %159 : vector<2x64xf32>
    %161 = arith.negf %160 : vector<2x64xf32>
    %162 = math.exp %161 : vector<2x64xf32>
    %cst_52 = arith.constant 1.000000e+00 : f32
    %163 = vector.broadcast %cst_52 : f32 to vector<2x64xf32>
    %164 = arith.addf %163, %162 : vector<2x64xf32>
    %165 = arith.divf %163, %164 : vector<2x64xf32>
    %166 = vector.extract_strided_slice %165 {offsets = [0, 0], sizes = [2, 32], strides = [1, 1]} : vector<2x64xf32> to vector<2x32xf32>
    %167 = vector.extract_strided_slice %165 {offsets = [0, 32], sizes = [2, 32], strides = [1, 1]} : vector<2x64xf32> to vector<2x32xf32>
    %168 = vector.extract_strided_slice %154 {offsets = [0, 64], sizes = [2, 32], strides = [1, 1]} : vector<2x96xf32> to vector<2x32xf32>
    %169 = vector.extract_strided_slice %157 {offsets = [0, 64], sizes = [2, 32], strides = [1, 1]} : vector<2x96xf32> to vector<2x32xf32>
    %170 = arith.mulf %166, %169 : vector<2x32xf32>
    %171 = arith.addf %168, %170 : vector<2x32xf32>
    %172 = math.tanh %171 : vector<2x32xf32>
    %173 = arith.subf %152, %172 : vector<2x32xf32>
    %174 = arith.mulf %167, %173 : vector<2x32xf32>
    %175 = arith.addf %172, %174 : vector<2x32xf32>
    %c12_53 = arith.constant 12 : index
    %c0_54 = arith.constant 0 : index
    %176 = vector.load %arg17[%c12_53, %c0_54] : memref<16x32xf32, #tpu.memory_space<vmem>>, vector<2x32xf32>
    tpu.vector_store %arg17[%c12_53, %c0_54], %175 {strides = array<i32>} : memref<16x32xf32, #tpu.memory_space<vmem>>, vector<2x32xf32>,
    %c14 = arith.constant 14 : index
    %c0_55 = arith.constant 0 : index
    %177 = vector.load %arg16[%c14, %c0_55] : memref<16x96xf32, #tpu.memory_space<vmem>>, vector<2x96xf32>
    %cst_56 = arith.constant dense<0.000000e+00> : vector<2x96xf32>
    %178 = tpu.matmul %175, %6, %cst_56 {dimension_numbers = #tpu.dot_dimension_numbers<[1], [0], [0], [1], [0, 0, 1, 1], [], []>} : vector<2x32xf32>, vector<32x96xf32>, vector<2x96xf32> -> vector<2x96xf32>
    %179 = vector.broadcast %7 : vector<1x96xf32> to vector<2x96xf32>
    %180 = arith.addf %178, %179 : vector<2x96xf32>
    %181 = vector.extract_strided_slice %177 {offsets = [0, 0], sizes = [2, 64], strides = [1, 1]} : vector<2x96xf32> to vector<2x64xf32>
    %182 = vector.extract_strided_slice %180 {offsets = [0, 0], sizes = [2, 64], strides = [1, 1]} : vector<2x96xf32> to vector<2x64xf32>
    %183 = arith.addf %181, %182 : vector<2x64xf32>
    %184 = arith.negf %183 : vector<2x64xf32>
    %185 = math.exp %184 : vector<2x64xf32>
    %cst_57 = arith.constant 1.000000e+00 : f32
    %186 = vector.broadcast %cst_57 : f32 to vector<2x64xf32>
    %187 = arith.addf %186, %185 : vector<2x64xf32>
    %188 = arith.divf %186, %187 : vector<2x64xf32>
    %189 = vector.extract_strided_slice %188 {offsets = [0, 0], sizes = [2, 32], strides = [1, 1]} : vector<2x64xf32> to vector<2x32xf32>
    %190 = vector.extract_strided_slice %188 {offsets = [0, 32], sizes = [2, 32], strides = [1, 1]} : vector<2x64xf32> to vector<2x32xf32>
    %191 = vector.extract_strided_slice %177 {offsets = [0, 64], sizes = [2, 32], strides = [1, 1]} : vector<2x96xf32> to vector<2x32xf32>
    %192 = vector.extract_strided_slice %180 {offsets = [0, 64], sizes = [2, 32], strides = [1, 1]} : vector<2x96xf32> to vector<2x32xf32>
    %193 = arith.mulf %189, %192 : vector<2x32xf32>
    %194 = arith.addf %191, %193 : vector<2x32xf32>
    %195 = math.tanh %194 : vector<2x32xf32>
    %196 = arith.subf %175, %195 : vector<2x32xf32>
    %197 = arith.mulf %190, %196 : vector<2x32xf32>
    %198 = arith.addf %195, %197 : vector<2x32xf32>
    %c14_58 = arith.constant 14 : index
    %c0_59 = arith.constant 0 : index
    %199 = vector.load %arg17[%c14_58, %c0_59] : memref<16x32xf32, #tpu.memory_space<vmem>>, vector<2x32xf32>
    tpu.vector_store %arg17[%c14_58, %c0_59], %198 {strides = array<i32>} : memref<16x32xf32, #tpu.memory_space<vmem>>, vector<2x32xf32>,
    %c0_60 = arith.constant 0 : index
    %c0_61 = arith.constant 0 : index
    %c0_62 = arith.constant 0 : index
    %200 = vector.load %arg15[%c0_60, %c0_61, %c0_62] : memref<2x2x32xf32, #tpu.memory_space<vmem>>, vector<1x2x32xf32>
    %201 = vector.shape_cast %200 : vector<1x2x32xf32> to vector<2x32xf32>
    %202 = vector.shape_cast %198 : vector<2x32xf32> to vector<1x2x32xf32>
    tpu.vector_store %arg15[%c0_60, %c0_61, %c0_62], %202 {strides = array<i32>} : memref<2x2x32xf32, #tpu.memory_space<vmem>>, vector<1x2x32xf32>,
    %c0_63 = arith.constant 0 : index
    %c0_64 = arith.constant 0 : index
    %203 = vector.load %arg17[%c0_63, %c0_64] : memref<16x32xf32, #tpu.memory_space<vmem>>, vector<16x32xf32>
    %c0_65 = arith.constant 0 : index
    %c0_66 = arith.constant 0 : index
    %204 = vector.load %arg9[%c0_65, %c0_66] : memref<32x96xf32, #tpu.memory_space<vmem>>, vector<32x96xf32>
    %c0_67 = arith.constant 0 : index
    %c0_68 = arith.constant 0 : index
    %205 = vector.load %arg11[%c0_67, %c0_68] : memref<1x96xf32, #tpu.memory_space<vmem>>, vector<1x96xf32>
    %c0_69 = arith.constant 0 : index
    %c0_70 = arith.constant 0 : index
    %206 = vector.load %arg8[%c0_69, %c0_70] : memref<32x96xf32, #tpu.memory_space<vmem>>, vector<32x96xf32>
    %cst_71 = arith.constant dense<0.000000e+00> : vector<16x96xf32>
    %207 = tpu.matmul %203, %206, %cst_71 {dimension_numbers = #tpu.dot_dimension_numbers<[1], [0], [0], [1], [0, 0, 1, 1], [], []>} : vector<16x32xf32>, vector<32x96xf32>, vector<16x96xf32> -> vector<16x96xf32>
    %c0_72 = arith.constant 0 : index
    %c0_73 = arith.constant 0 : index
    %208 = vector.load %arg10[%c0_72, %c0_73] : memref<1x96xf32, #tpu.memory_space<vmem>>, vector<1x96xf32>
    %209 = vector.broadcast %208 : vector<1x96xf32> to vector<16x96xf32>
    %210 = arith.addf %207, %209 : vector<16x96xf32>
    %c0_74 = arith.constant 0 : index
    %c0_75 = arith.constant 0 : index
    %211 = vector.load %arg16[%c0_74, %c0_75] : memref<16x96xf32, #tpu.memory_space<vmem>>, vector<16x96xf32>
    tpu.vector_store %arg16[%c0_74, %c0_75], %210 {strides = array<i32>} : memref<16x96xf32, #tpu.memory_space<vmem>>, vector<16x96xf32>,
    %c1 = arith.constant 1 : index
    %c0_76 = arith.constant 0 : index
    %c0_77 = arith.constant 0 : index
    %212 = vector.load %arg1[%c1, %c0_76, %c0_77] : memref<2x2x32xf32, #tpu.memory_space<vmem>>, vector<1x2x32xf32>
    %213 = vector.shape_cast %212 : vector<1x2x32xf32> to vector<2x32xf32>
    %c0_78 = arith.constant 0 : index
    %c0_79 = arith.constant 0 : index
    %214 = vector.load %arg16[%c0_78, %c0_79] : memref<16x96xf32, #tpu.memory_space<vmem>>, vector<2x96xf32>
    %cst_80 = arith.constant dense<0.000000e+00> : vector<2x96xf32>
    %215 = tpu.matmul %213, %204, %cst_80 {dimension_numbers = #tpu.dot_dimension_numbers<[1], [0], [0], [1], [0, 0, 1, 1], [], []>} : vector<2x32xf32>, vector<32x96xf32>, vector<2x96xf32> -> vector<2x96xf32>
    %216 = vector.broadcast %205 : vector<1x96xf32> to vector<2x96xf32>
    %217 = arith.addf %215, %216 : vector<2x96xf32>
    %218 = vector.extract_strided_slice %214 {offsets = [0, 0], sizes = [2, 64], strides = [1, 1]} : vector<2x96xf32> to vector<2x64xf32>
    %219 = vector.extract_strided_slice %217 {offsets = [0, 0], sizes = [2, 64], strides = [1, 1]} : vector<2x96xf32> to vector<2x64xf32>
    %220 = arith.addf %218, %219 : vector<2x64xf32>
    %221 = arith.negf %220 : vector<2x64xf32>
    %222 = math.exp %221 : vector<2x64xf32>
    %cst_81 = arith.constant 1.000000e+00 : f32
    %223 = vector.broadcast %cst_81 : f32 to vector<2x64xf32>
    %224 = arith.addf %223, %222 : vector<2x64xf32>
    %225 = arith.divf %223, %224 : vector<2x64xf32>
    %226 = vector.extract_strided_slice %225 {offsets = [0, 0], sizes = [2, 32], strides = [1, 1]} : vector<2x64xf32> to vector<2x32xf32>
    %227 = vector.extract_strided_slice %225 {offsets = [0, 32], sizes = [2, 32], strides = [1, 1]} : vector<2x64xf32> to vector<2x32xf32>
    %228 = vector.extract_strided_slice %214 {offsets = [0, 64], sizes = [2, 32], strides = [1, 1]} : vector<2x96xf32> to vector<2x32xf32>
    %229 = vector.extract_strided_slice %217 {offsets = [0, 64], sizes = [2, 32], strides = [1, 1]} : vector<2x96xf32> to vector<2x32xf32>
    %230 = arith.mulf %226, %229 : vector<2x32xf32>
    %231 = arith.addf %228, %230 : vector<2x32xf32>
    %232 = math.tanh %231 : vector<2x32xf32>
    %233 = arith.subf %213, %232 : vector<2x32xf32>
    %234 = arith.mulf %227, %233 : vector<2x32xf32>
    %235 = arith.addf %232, %234 : vector<2x32xf32>
    %c0_82 = arith.constant 0 : index
    %c0_83 = arith.constant 0 : index
    %236 = vector.load %arg17[%c0_82, %c0_83] : memref<16x32xf32, #tpu.memory_space<vmem>>, vector<2x32xf32>
    tpu.vector_store %arg17[%c0_82, %c0_83], %235 {strides = array<i32>} : memref<16x32xf32, #tpu.memory_space<vmem>>, vector<2x32xf32>,
    %c2_84 = arith.constant 2 : index
    %c0_85 = arith.constant 0 : index
    %237 = vector.load %arg16[%c2_84, %c0_85] : memref<16x96xf32, #tpu.memory_space<vmem>>, vector<2x96xf32>
    %cst_86 = arith.constant dense<0.000000e+00> : vector<2x96xf32>
    %238 = tpu.matmul %235, %204, %cst_86 {dimension_numbers = #tpu.dot_dimension_numbers<[1], [0], [0], [1], [0, 0, 1, 1], [], []>} : vector<2x32xf32>, vector<32x96xf32>, vector<2x96xf32> -> vector<2x96xf32>
    %239 = vector.broadcast %205 : vector<1x96xf32> to vector<2x96xf32>
    %240 = arith.addf %238, %239 : vector<2x96xf32>
    %241 = vector.extract_strided_slice %237 {offsets = [0, 0], sizes = [2, 64], strides = [1, 1]} : vector<2x96xf32> to vector<2x64xf32>
    %242 = vector.extract_strided_slice %240 {offsets = [0, 0], sizes = [2, 64], strides = [1, 1]} : vector<2x96xf32> to vector<2x64xf32>
    %243 = arith.addf %241, %242 : vector<2x64xf32>
    %244 = arith.negf %243 : vector<2x64xf32>
    %245 = math.exp %244 : vector<2x64xf32>
    %cst_87 = arith.constant 1.000000e+00 : f32
    %246 = vector.broadcast %cst_87 : f32 to vector<2x64xf32>
    %247 = arith.addf %246, %245 : vector<2x64xf32>
    %248 = arith.divf %246, %247 : vector<2x64xf32>
    %249 = vector.extract_strided_slice %248 {offsets = [0, 0], sizes = [2, 32], strides = [1, 1]} : vector<2x64xf32> to vector<2x32xf32>
    %250 = vector.extract_strided_slice %248 {offsets = [0, 32], sizes = [2, 32], strides = [1, 1]} : vector<2x64xf32> to vector<2x32xf32>
    %251 = vector.extract_strided_slice %237 {offsets = [0, 64], sizes = [2, 32], strides = [1, 1]} : vector<2x96xf32> to vector<2x32xf32>
    %252 = vector.extract_strided_slice %240 {offsets = [0, 64], sizes = [2, 32], strides = [1, 1]} : vector<2x96xf32> to vector<2x32xf32>
    %253 = arith.mulf %249, %252 : vector<2x32xf32>
    %254 = arith.addf %251, %253 : vector<2x32xf32>
    %255 = math.tanh %254 : vector<2x32xf32>
    %256 = arith.subf %235, %255 : vector<2x32xf32>
    %257 = arith.mulf %250, %256 : vector<2x32xf32>
    %258 = arith.addf %255, %257 : vector<2x32xf32>
    %c2_88 = arith.constant 2 : index
    %c0_89 = arith.constant 0 : index
    %259 = vector.load %arg17[%c2_88, %c0_89] : memref<16x32xf32, #tpu.memory_space<vmem>>, vector<2x32xf32>
    tpu.vector_store %arg17[%c2_88, %c0_89], %258 {strides = array<i32>} : memref<16x32xf32, #tpu.memory_space<vmem>>, vector<2x32xf32>,
    %c4_90 = arith.constant 4 : index
    %c0_91 = arith.constant 0 : index
    %260 = vector.load %arg16[%c4_90, %c0_91] : memref<16x96xf32, #tpu.memory_space<vmem>>, vector<2x96xf32>
    %cst_92 = arith.constant dense<0.000000e+00> : vector<2x96xf32>
    %261 = tpu.matmul %258, %204, %cst_92 {dimension_numbers = #tpu.dot_dimension_numbers<[1], [0], [0], [1], [0, 0, 1, 1], [], []>} : vector<2x32xf32>, vector<32x96xf32>, vector<2x96xf32> -> vector<2x96xf32>
    %262 = vector.broadcast %205 : vector<1x96xf32> to vector<2x96xf32>
    %263 = arith.addf %261, %262 : vector<2x96xf32>
    %264 = vector.extract_strided_slice %260 {offsets = [0, 0], sizes = [2, 64], strides = [1, 1]} : vector<2x96xf32> to vector<2x64xf32>
    %265 = vector.extract_strided_slice %263 {offsets = [0, 0], sizes = [2, 64], strides = [1, 1]} : vector<2x96xf32> to vector<2x64xf32>
    %266 = arith.addf %264, %265 : vector<2x64xf32>
    %267 = arith.negf %266 : vector<2x64xf32>
    %268 = math.exp %267 : vector<2x64xf32>
    %cst_93 = arith.constant 1.000000e+00 : f32
    %269 = vector.broadcast %cst_93 : f32 to vector<2x64xf32>
    %270 = arith.addf %269, %268 : vector<2x64xf32>
    %271 = arith.divf %269, %270 : vector<2x64xf32>
    %272 = vector.extract_strided_slice %271 {offsets = [0, 0], sizes = [2, 32], strides = [1, 1]} : vector<2x64xf32> to vector<2x32xf32>
    %273 = vector.extract_strided_slice %271 {offsets = [0, 32], sizes = [2, 32], strides = [1, 1]} : vector<2x64xf32> to vector<2x32xf32>
    %274 = vector.extract_strided_slice %260 {offsets = [0, 64], sizes = [2, 32], strides = [1, 1]} : vector<2x96xf32> to vector<2x32xf32>
    %275 = vector.extract_strided_slice %263 {offsets = [0, 64], sizes = [2, 32], strides = [1, 1]} : vector<2x96xf32> to vector<2x32xf32>
    %276 = arith.mulf %272, %275 : vector<2x32xf32>
    %277 = arith.addf %274, %276 : vector<2x32xf32>
    %278 = math.tanh %277 : vector<2x32xf32>
    %279 = arith.subf %258, %278 : vector<2x32xf32>
    %280 = arith.mulf %273, %279 : vector<2x32xf32>
    %281 = arith.addf %278, %280 : vector<2x32xf32>
    %c4_94 = arith.constant 4 : index
    %c0_95 = arith.constant 0 : index
    %282 = vector.load %arg17[%c4_94, %c0_95] : memref<16x32xf32, #tpu.memory_space<vmem>>, vector<2x32xf32>
    tpu.vector_store %arg17[%c4_94, %c0_95], %281 {strides = array<i32>} : memref<16x32xf32, #tpu.memory_space<vmem>>, vector<2x32xf32>,
    %c6_96 = arith.constant 6 : index
    %c0_97 = arith.constant 0 : index
    %283 = vector.load %arg16[%c6_96, %c0_97] : memref<16x96xf32, #tpu.memory_space<vmem>>, vector<2x96xf32>
    %cst_98 = arith.constant dense<0.000000e+00> : vector<2x96xf32>
    %284 = tpu.matmul %281, %204, %cst_98 {dimension_numbers = #tpu.dot_dimension_numbers<[1], [0], [0], [1], [0, 0, 1, 1], [], []>} : vector<2x32xf32>, vector<32x96xf32>, vector<2x96xf32> -> vector<2x96xf32>
    %285 = vector.broadcast %205 : vector<1x96xf32> to vector<2x96xf32>
    %286 = arith.addf %284, %285 : vector<2x96xf32>
    %287 = vector.extract_strided_slice %283 {offsets = [0, 0], sizes = [2, 64], strides = [1, 1]} : vector<2x96xf32> to vector<2x64xf32>
    %288 = vector.extract_strided_slice %286 {offsets = [0, 0], sizes = [2, 64], strides = [1, 1]} : vector<2x96xf32> to vector<2x64xf32>
    %289 = arith.addf %287, %288 : vector<2x64xf32>
    %290 = arith.negf %289 : vector<2x64xf32>
    %291 = math.exp %290 : vector<2x64xf32>
    %cst_99 = arith.constant 1.000000e+00 : f32
    %292 = vector.broadcast %cst_99 : f32 to vector<2x64xf32>
    %293 = arith.addf %292, %291 : vector<2x64xf32>
    %294 = arith.divf %292, %293 : vector<2x64xf32>
    %295 = vector.extract_strided_slice %294 {offsets = [0, 0], sizes = [2, 32], strides = [1, 1]} : vector<2x64xf32> to vector<2x32xf32>
    %296 = vector.extract_strided_slice %294 {offsets = [0, 32], sizes = [2, 32], strides = [1, 1]} : vector<2x64xf32> to vector<2x32xf32>
    %297 = vector.extract_strided_slice %283 {offsets = [0, 64], sizes = [2, 32], strides = [1, 1]} : vector<2x96xf32> to vector<2x32xf32>
    %298 = vector.extract_strided_slice %286 {offsets = [0, 64], sizes = [2, 32], strides = [1, 1]} : vector<2x96xf32> to vector<2x32xf32>
    %299 = arith.mulf %295, %298 : vector<2x32xf32>
    %300 = arith.addf %297, %299 : vector<2x32xf32>
    %301 = math.tanh %300 : vector<2x32xf32>
    %302 = arith.subf %281, %301 : vector<2x32xf32>
    %303 = arith.mulf %296, %302 : vector<2x32xf32>
    %304 = arith.addf %301, %303 : vector<2x32xf32>
    %c6_100 = arith.constant 6 : index
    %c0_101 = arith.constant 0 : index
    %305 = vector.load %arg17[%c6_100, %c0_101] : memref<16x32xf32, #tpu.memory_space<vmem>>, vector<2x32xf32>
    tpu.vector_store %arg17[%c6_100, %c0_101], %304 {strides = array<i32>} : memref<16x32xf32, #tpu.memory_space<vmem>>, vector<2x32xf32>,
    %c8_102 = arith.constant 8 : index
    %c0_103 = arith.constant 0 : index
    %306 = vector.load %arg16[%c8_102, %c0_103] : memref<16x96xf32, #tpu.memory_space<vmem>>, vector<2x96xf32>
    %cst_104 = arith.constant dense<0.000000e+00> : vector<2x96xf32>
    %307 = tpu.matmul %304, %204, %cst_104 {dimension_numbers = #tpu.dot_dimension_numbers<[1], [0], [0], [1], [0, 0, 1, 1], [], []>} : vector<2x32xf32>, vector<32x96xf32>, vector<2x96xf32> -> vector<2x96xf32>
    %308 = vector.broadcast %205 : vector<1x96xf32> to vector<2x96xf32>
    %309 = arith.addf %307, %308 : vector<2x96xf32>
    %310 = vector.extract_strided_slice %306 {offsets = [0, 0], sizes = [2, 64], strides = [1, 1]} : vector<2x96xf32> to vector<2x64xf32>
    %311 = vector.extract_strided_slice %309 {offsets = [0, 0], sizes = [2, 64], strides = [1, 1]} : vector<2x96xf32> to vector<2x64xf32>
    %312 = arith.addf %310, %311 : vector<2x64xf32>
    %313 = arith.negf %312 : vector<2x64xf32>
    %314 = math.exp %313 : vector<2x64xf32>
    %cst_105 = arith.constant 1.000000e+00 : f32
    %315 = vector.broadcast %cst_105 : f32 to vector<2x64xf32>
    %316 = arith.addf %315, %314 : vector<2x64xf32>
    %317 = arith.divf %315, %316 : vector<2x64xf32>
    %318 = vector.extract_strided_slice %317 {offsets = [0, 0], sizes = [2, 32], strides = [1, 1]} : vector<2x64xf32> to vector<2x32xf32>
    %319 = vector.extract_strided_slice %317 {offsets = [0, 32], sizes = [2, 32], strides = [1, 1]} : vector<2x64xf32> to vector<2x32xf32>
    %320 = vector.extract_strided_slice %306 {offsets = [0, 64], sizes = [2, 32], strides = [1, 1]} : vector<2x96xf32> to vector<2x32xf32>
    %321 = vector.extract_strided_slice %309 {offsets = [0, 64], sizes = [2, 32], strides = [1, 1]} : vector<2x96xf32> to vector<2x32xf32>
    %322 = arith.mulf %318, %321 : vector<2x32xf32>
    %323 = arith.addf %320, %322 : vector<2x32xf32>
    %324 = math.tanh %323 : vector<2x32xf32>
    %325 = arith.subf %304, %324 : vector<2x32xf32>
    %326 = arith.mulf %319, %325 : vector<2x32xf32>
    %327 = arith.addf %324, %326 : vector<2x32xf32>
    %c8_106 = arith.constant 8 : index
    %c0_107 = arith.constant 0 : index
    %328 = vector.load %arg17[%c8_106, %c0_107] : memref<16x32xf32, #tpu.memory_space<vmem>>, vector<2x32xf32>
    tpu.vector_store %arg17[%c8_106, %c0_107], %327 {strides = array<i32>} : memref<16x32xf32, #tpu.memory_space<vmem>>, vector<2x32xf32>,
    %c10_108 = arith.constant 10 : index
    %c0_109 = arith.constant 0 : index
    %329 = vector.load %arg16[%c10_108, %c0_109] : memref<16x96xf32, #tpu.memory_space<vmem>>, vector<2x96xf32>
    %cst_110 = arith.constant dense<0.000000e+00> : vector<2x96xf32>
    %330 = tpu.matmul %327, %204, %cst_110 {dimension_numbers = #tpu.dot_dimension_numbers<[1], [0], [0], [1], [0, 0, 1, 1], [], []>} : vector<2x32xf32>, vector<32x96xf32>, vector<2x96xf32> -> vector<2x96xf32>
    %331 = vector.broadcast %205 : vector<1x96xf32> to vector<2x96xf32>
    %332 = arith.addf %330, %331 : vector<2x96xf32>
    %333 = vector.extract_strided_slice %329 {offsets = [0, 0], sizes = [2, 64], strides = [1, 1]} : vector<2x96xf32> to vector<2x64xf32>
    %334 = vector.extract_strided_slice %332 {offsets = [0, 0], sizes = [2, 64], strides = [1, 1]} : vector<2x96xf32> to vector<2x64xf32>
    %335 = arith.addf %333, %334 : vector<2x64xf32>
    %336 = arith.negf %335 : vector<2x64xf32>
    %337 = math.exp %336 : vector<2x64xf32>
    %cst_111 = arith.constant 1.000000e+00 : f32
    %338 = vector.broadcast %cst_111 : f32 to vector<2x64xf32>
    %339 = arith.addf %338, %337 : vector<2x64xf32>
    %340 = arith.divf %338, %339 : vector<2x64xf32>
    %341 = vector.extract_strided_slice %340 {offsets = [0, 0], sizes = [2, 32], strides = [1, 1]} : vector<2x64xf32> to vector<2x32xf32>
    %342 = vector.extract_strided_slice %340 {offsets = [0, 32], sizes = [2, 32], strides = [1, 1]} : vector<2x64xf32> to vector<2x32xf32>
    %343 = vector.extract_strided_slice %329 {offsets = [0, 64], sizes = [2, 32], strides = [1, 1]} : vector<2x96xf32> to vector<2x32xf32>
    %344 = vector.extract_strided_slice %332 {offsets = [0, 64], sizes = [2, 32], strides = [1, 1]} : vector<2x96xf32> to vector<2x32xf32>
    %345 = arith.mulf %341, %344 : vector<2x32xf32>
    %346 = arith.addf %343, %345 : vector<2x32xf32>
    %347 = math.tanh %346 : vector<2x32xf32>
    %348 = arith.subf %327, %347 : vector<2x32xf32>
    %349 = arith.mulf %342, %348 : vector<2x32xf32>
    %350 = arith.addf %347, %349 : vector<2x32xf32>
    %c10_112 = arith.constant 10 : index
    %c0_113 = arith.constant 0 : index
    %351 = vector.load %arg17[%c10_112, %c0_113] : memref<16x32xf32, #tpu.memory_space<vmem>>, vector<2x32xf32>
    tpu.vector_store %arg17[%c10_112, %c0_113], %350 {strides = array<i32>} : memref<16x32xf32, #tpu.memory_space<vmem>>, vector<2x32xf32>,
    %c12_114 = arith.constant 12 : index
    %c0_115 = arith.constant 0 : index
    %352 = vector.load %arg16[%c12_114, %c0_115] : memref<16x96xf32, #tpu.memory_space<vmem>>, vector<2x96xf32>
    %cst_116 = arith.constant dense<0.000000e+00> : vector<2x96xf32>
    %353 = tpu.matmul %350, %204, %cst_116 {dimension_numbers = #tpu.dot_dimension_numbers<[1], [0], [0], [1], [0, 0, 1, 1], [], []>} : vector<2x32xf32>, vector<32x96xf32>, vector<2x96xf32> -> vector<2x96xf32>
    %354 = vector.broadcast %205 : vector<1x96xf32> to vector<2x96xf32>
    %355 = arith.addf %353, %354 : vector<2x96xf32>
    %356 = vector.extract_strided_slice %352 {offsets = [0, 0], sizes = [2, 64], strides = [1, 1]} : vector<2x96xf32> to vector<2x64xf32>
    %357 = vector.extract_strided_slice %355 {offsets = [0, 0], sizes = [2, 64], strides = [1, 1]} : vector<2x96xf32> to vector<2x64xf32>
    %358 = arith.addf %356, %357 : vector<2x64xf32>
    %359 = arith.negf %358 : vector<2x64xf32>
    %360 = math.exp %359 : vector<2x64xf32>
    %cst_117 = arith.constant 1.000000e+00 : f32
    %361 = vector.broadcast %cst_117 : f32 to vector<2x64xf32>
    %362 = arith.addf %361, %360 : vector<2x64xf32>
    %363 = arith.divf %361, %362 : vector<2x64xf32>
    %364 = vector.extract_strided_slice %363 {offsets = [0, 0], sizes = [2, 32], strides = [1, 1]} : vector<2x64xf32> to vector<2x32xf32>
    %365 = vector.extract_strided_slice %363 {offsets = [0, 32], sizes = [2, 32], strides = [1, 1]} : vector<2x64xf32> to vector<2x32xf32>
    %366 = vector.extract_strided_slice %352 {offsets = [0, 64], sizes = [2, 32], strides = [1, 1]} : vector<2x96xf32> to vector<2x32xf32>
    %367 = vector.extract_strided_slice %355 {offsets = [0, 64], sizes = [2, 32], strides = [1, 1]} : vector<2x96xf32> to vector<2x32xf32>
    %368 = arith.mulf %364, %367 : vector<2x32xf32>
    %369 = arith.addf %366, %368 : vector<2x32xf32>
    %370 = math.tanh %369 : vector<2x32xf32>
    %371 = arith.subf %350, %370 : vector<2x32xf32>
    %372 = arith.mulf %365, %371 : vector<2x32xf32>
    %373 = arith.addf %370, %372 : vector<2x32xf32>
    %c12_118 = arith.constant 12 : index
    %c0_119 = arith.constant 0 : index
    %374 = vector.load %arg17[%c12_118, %c0_119] : memref<16x32xf32, #tpu.memory_space<vmem>>, vector<2x32xf32>
    tpu.vector_store %arg17[%c12_118, %c0_119], %373 {strides = array<i32>} : memref<16x32xf32, #tpu.memory_space<vmem>>, vector<2x32xf32>,
    %c14_120 = arith.constant 14 : index
    %c0_121 = arith.constant 0 : index
    %375 = vector.load %arg16[%c14_120, %c0_121] : memref<16x96xf32, #tpu.memory_space<vmem>>, vector<2x96xf32>
    %cst_122 = arith.constant dense<0.000000e+00> : vector<2x96xf32>
    %376 = tpu.matmul %373, %204, %cst_122 {dimension_numbers = #tpu.dot_dimension_numbers<[1], [0], [0], [1], [0, 0, 1, 1], [], []>} : vector<2x32xf32>, vector<32x96xf32>, vector<2x96xf32> -> vector<2x96xf32>
    %377 = vector.broadcast %205 : vector<1x96xf32> to vector<2x96xf32>
    %378 = arith.addf %376, %377 : vector<2x96xf32>
    %379 = vector.extract_strided_slice %375 {offsets = [0, 0], sizes = [2, 64], strides = [1, 1]} : vector<2x96xf32> to vector<2x64xf32>
    %380 = vector.extract_strided_slice %378 {offsets = [0, 0], sizes = [2, 64], strides = [1, 1]} : vector<2x96xf32> to vector<2x64xf32>
    %381 = arith.addf %379, %380 : vector<2x64xf32>
    %382 = arith.negf %381 : vector<2x64xf32>
    %383 = math.exp %382 : vector<2x64xf32>
    %cst_123 = arith.constant 1.000000e+00 : f32
    %384 = vector.broadcast %cst_123 : f32 to vector<2x64xf32>
    %385 = arith.addf %384, %383 : vector<2x64xf32>
    %386 = arith.divf %384, %385 : vector<2x64xf32>
    %387 = vector.extract_strided_slice %386 {offsets = [0, 0], sizes = [2, 32], strides = [1, 1]} : vector<2x64xf32> to vector<2x32xf32>
    %388 = vector.extract_strided_slice %386 {offsets = [0, 32], sizes = [2, 32], strides = [1, 1]} : vector<2x64xf32> to vector<2x32xf32>
    %389 = vector.extract_strided_slice %375 {offsets = [0, 64], sizes = [2, 32], strides = [1, 1]} : vector<2x96xf32> to vector<2x32xf32>
    %390 = vector.extract_strided_slice %378 {offsets = [0, 64], sizes = [2, 32], strides = [1, 1]} : vector<2x96xf32> to vector<2x32xf32>
    %391 = arith.mulf %387, %390 : vector<2x32xf32>
    %392 = arith.addf %389, %391 : vector<2x32xf32>
    %393 = math.tanh %392 : vector<2x32xf32>
    %394 = arith.subf %373, %393 : vector<2x32xf32>
    %395 = arith.mulf %388, %394 : vector<2x32xf32>
    %396 = arith.addf %393, %395 : vector<2x32xf32>
    %c14_124 = arith.constant 14 : index
    %c0_125 = arith.constant 0 : index
    %397 = vector.load %arg17[%c14_124, %c0_125] : memref<16x32xf32, #tpu.memory_space<vmem>>, vector<2x32xf32>
    tpu.vector_store %arg17[%c14_124, %c0_125], %396 {strides = array<i32>} : memref<16x32xf32, #tpu.memory_space<vmem>>, vector<2x32xf32>,
    %c1_126 = arith.constant 1 : index
    %c0_127 = arith.constant 0 : index
    %c0_128 = arith.constant 0 : index
    %398 = vector.load %arg15[%c1_126, %c0_127, %c0_128] : memref<2x2x32xf32, #tpu.memory_space<vmem>>, vector<1x2x32xf32>
    %399 = vector.shape_cast %398 : vector<1x2x32xf32> to vector<2x32xf32>
    %400 = vector.shape_cast %396 : vector<2x32xf32> to vector<1x2x32xf32>
    tpu.vector_store %arg15[%c1_126, %c0_127, %c0_128], %400 {strides = array<i32>} : memref<2x2x32xf32, #tpu.memory_space<vmem>>, vector<1x2x32xf32>,
    %c0_129 = arith.constant 0 : index
    %c0_130 = arith.constant 0 : index
    %401 = vector.load %arg17[%c0_129, %c0_130] : memref<16x32xf32, #tpu.memory_space<vmem>>, vector<16x32xf32>
    %c0_131 = arith.constant 0 : index
    %c0_132 = arith.constant 0 : index
    %402 = vector.load %arg12[%c0_131, %c0_132] : memref<32x4xf32, #tpu.memory_space<vmem>>, vector<32x4xf32>
    %cst_133 = arith.constant dense<0.000000e+00> : vector<16x4xf32>
    %403 = tpu.matmul %401, %402, %cst_133 {dimension_numbers = #tpu.dot_dimension_numbers<[1], [0], [0], [1], [0, 0, 1, 1], [], []>} : vector<16x32xf32>, vector<32x4xf32>, vector<16x4xf32> -> vector<16x4xf32>
    %c0_134 = arith.constant 0 : index
    %c0_135 = arith.constant 0 : index
    %404 = vector.load %arg13[%c0_134, %c0_135] : memref<1x4xf32, #tpu.memory_space<vmem>>, vector<1x4xf32>
    %405 = vector.broadcast %404 : vector<1x4xf32> to vector<16x4xf32>
    %406 = arith.addf %403, %405 : vector<16x4xf32>
    %c0_136 = arith.constant 0 : index
    %c0_137 = arith.constant 0 : index
    %407 = vector.load %arg14[%c0_136, %c0_137] : memref<16x4xf32, #tpu.memory_space<vmem>>, vector<16x4xf32>
    tpu.vector_store %arg14[%c0_136, %c0_137], %406 {strides = array<i32>} : memref<16x4xf32, #tpu.memory_space<vmem>>, vector<16x4xf32>,
    return
  }
}

</mosaic_0001>

<llo_original>
// kernel: tpu_custom_call.1
$region0: #{tpu_custom_call.1}
  #allocation0 [shape = 'u32[]', space=smem, size = 0x4, offset = 0x4, fixed_abs, tag = 'smem constant byte address 0x4 - core index']
  #allocation1 [shape = 'u32[144,128]{1,0:T(1,128)}', space=vmem, size = 0x12000, scoped, tag = 'internal scratch']
  #allocation2 [shape = 'f32[16,96]{1,0:T(8,128)}', space=vmem, size = 0x2000, scoped, tag = 'scratch operand']
  #allocation3 [shape = 'f32[16,32]{1,0:T(8,128)}', space=vmem, size = 0x2000, scoped, tag = 'scratch operand']
  %s0 = inlined_call_operand.vmem [shape: f32[16,4], index: 0, kind: input, shape index: {}]
  %s1 = inlined_call_operand.hbm [shape: f32[2,2,32], index: 1, kind: input, shape index: {}]
  %s2 = inlined_call_operand.hbm [shape: f32[4,16], index: 2, kind: input, shape index: {}]
  %s3 = inlined_call_operand.vmem [shape: f32[1,16], index: 3, kind: input, shape index: {}]
  %s4 = inlined_call_operand.hbm [shape: f32[16,96], index: 4, kind: input, shape index: {}]
  %s5 = inlined_call_operand.vmem [shape: f32[32,96], index: 5, kind: input, shape index: {}]
  %s6 = inlined_call_operand.vmem [shape: f32[1,96], index: 6, kind: input, shape index: {}]
  %s7 = inlined_call_operand.vmem [shape: f32[1,96], index: 7, kind: input, shape index: {}]
  %s8 = inlined_call_operand.vmem [shape: f32[32,96], index: 8, kind: input, shape index: {}]
  %s9 = inlined_call_operand.hbm [shape: f32[32,96], index: 9, kind: input, shape index: {}]
  %s10 = inlined_call_operand.vmem [shape: f32[1,96], index: 10, kind: input, shape index: {}]
  %s11 = inlined_call_operand.vmem [shape: f32[1,96], index: 11, kind: input, shape index: {}]
  %s12 = inlined_call_operand.vmem [shape: f32[32,4], index: 12, kind: input, shape index: {}]
  %s13 = inlined_call_operand.vmem [shape: f32[1,4], index: 13, kind: input, shape index: {}]
  %s14 = inlined_call_operand.vmem [shape: f32[16,4], index: 14, kind: output, shape index: {0}]
  %s15 = inlined_call_operand.hbm [shape: f32[2,2,32], index: 15, kind: output, shape index: {1}]
  %16 = xla_tuple %s14, %s15
  %s17 = sld [smem:[#allocation0]]
  $region90: #{tpu_custom_call.1} parent=0
    _
  %s19 = ssub.s32 1, %s17
  %s20 = scalar_select 0, %s19, %s17
  $region1: #{tpu_custom_call.1} parent=0
    #allocation4 [shape = 'u8[2048]{0}', space=vmem, size = 0x800, scoped, tag = 'input window, operand 1, single buffered']
    #allocation5 [shape = 's32[1]{0}', space=sflag, size = 0x4, scoped, tag = 'scoped memory for tpu_custom_call.1']
    #allocation6 [shape = 's32[1]{0}', space=sflag, size = 0x4, scoped, tag = 'scoped memory for tpu_custom_call.1']
    #allocation7 [shape = 'u8[2048]{0}', space=vmem, size = 0x800, scoped, tag = 'input window, operand 2, single buffered']
    #allocation8 [shape = 's32[1]{0}', space=sflag, size = 0x4, scoped, tag = 'scoped memory for tpu_custom_call.1']
    #allocation9 [shape = 'u8[8192]{0}', space=vmem, size = 0x2000, scoped, tag = 'input window, operand 4, single buffered']
    #allocation10 [shape = 'u8[16384]{0}', space=vmem, size = 0x4000, scoped, tag = 'input window, operand 9, single buffered']
    #allocation11 [shape = 's32[1]{0}', space=sflag, size = 0x4, scoped, tag = 'scoped memory for tpu_custom_call.1']
    #allocation12 [shape = 'u8[2048]{0}', space=vmem, size = 0x800, scoped, tag = 'output window, operand 1, single buffered']
    %21 = vsyncpa [#allocation5], 0
    %22 = vsyncpa [#allocation8], 0
    %23 = vsyncpa [#allocation11], 0
    %24 = vsyncpa [#allocation6], 0
    // Predicated region
    $region2: #{tpu_custom_call.1} parent=1 // pred_check
      _
    $region3: #{tpu_custom_call.1} parent=1 // pred_check_branch
      %26 = sbr.rel (0) target = $region5
    $region4: #{tpu_custom_call.1} parent=1 // pred_region
      _
    $region5: #{tpu_custom_call.1} parent=1 // pred_fallthru
      _
    // Predicated region
    $region6: #{tpu_custom_call.1} parent=1 // pred_check
      _
    $region7: #{tpu_custom_call.1} parent=1 // pred_check_branch
      %28 = sbr.rel (0) target = $region9
    $region8: #{tpu_custom_call.1} parent=1 // pred_region
      %s30 = ssub.s32 64, 64
      %31 = vsyncadd [#allocation5], %s30
      %s32 = sshll.u32 [#allocation4], 4
      %s33 = int_to_ptr.vmem [resolvable:$true] %s32
      %38 = dma.hbm_to_vmem [thread:$0]  %s1, 64, %s33, [#allocation5], 32, 32, 2
    $region9: #{tpu_custom_call.1} parent=1 // pred_fallthru
      _
    // Predicated region
    $region10: #{tpu_custom_call.1} parent=1 // pred_check
      _
    $region11: #{tpu_custom_call.1} parent=1 // pred_check_branch
      %40 = sbr.rel (0) target = $region13
    $region12: #{tpu_custom_call.1} parent=1 // pred_region
      %s42 = ssub.s32 64, 64
      %43 = vsyncadd [#allocation8], %s42
      %s45 = sshll.u32 [#allocation7], 4
      %s46 = int_to_ptr.vmem [resolvable:$true] %s45
      %48 = dma.hbm_to_vmem [thread:$0]  %s2, 64, %s46, [#allocation8]
    $region13: #{tpu_custom_call.1} parent=1 // pred_fallthru
      _
    // Predicated region
    $region14: #{tpu_custom_call.1} parent=1 // pred_check
      _
    $region15: #{tpu_custom_call.1} parent=1 // pred_check_branch
      %50 = sbr.rel (0) target = $region17
    $region16: #{tpu_custom_call.1} parent=1 // pred_region
      _
    $region17: #{tpu_custom_call.1} parent=1 // pred_fallthru
      _
    // Predicated region
    $region18: #{tpu_custom_call.1} parent=1 // pred_check
      _
    $region19: #{tpu_custom_call.1} parent=1 // pred_check_branch
      %52 = sbr.rel (0) target = $region21
    $region20: #{tpu_custom_call.1} parent=1 // pred_region
      %s54 = ssub.s32 256, 256
      %55 = vsyncadd [#allocation8], %s54
      %s56 = sshll.u32 [#allocation9], 4
      %s57 = int_to_ptr.vmem [resolvable:$true] %s56
      %62 = dma.hbm_to_vmem [thread:$0]  %s4, 256, %s57, [#allocation8], 128, 128, 8
    $region21: #{tpu_custom_call.1} parent=1 // pred_fallthru
      _
    // Predicated region
    $region22: #{tpu_custom_call.1} parent=1 // pred_check
      _
    $region23: #{tpu_custom_call.1} parent=1 // pred_check_branch
      %64 = sbr.rel (0) target = $region25
    $region24: #{tpu_custom_call.1} parent=1 // pred_region
      _
    $region25: #{tpu_custom_call.1} parent=1 // pred_fallthru
      _
    // Predicated region
    $region26: #{tpu_custom_call.1} parent=1 // pred_check
      _
    $region27: #{tpu_custom_call.1} parent=1 // pred_check_branch
      %66 = sbr.rel (0) target = $region29
    $region28: #{tpu_custom_call.1} parent=1 // pred_region
      _
    $region29: #{tpu_custom_call.1} parent=1 // pred_fallthru
      _
    // Predicated region
    $region30: #{tpu_custom_call.1} parent=1 // pred_check
      _
    $region31: #{tpu_custom_call.1} parent=1 // pred_check_branch
      %68 = sbr.rel (0) target = $region33
    $region32: #{tpu_custom_call.1} parent=1 // pred_region
      _
    $region33: #{tpu_custom_call.1} parent=1 // pred_fallthru
      _
    // Predicated region
    $region34: #{tpu_custom_call.1} parent=1 // pred_check
      _
    $region35: #{tpu_custom_call.1} parent=1 // pred_check_branch
      %70 = sbr.rel (0) target = $region37
    $region36: #{tpu_custom_call.1} parent=1 // pred_region
      _
    $region37: #{tpu_custom_call.1} parent=1 // pred_fallthru
      _
    // Predicated region
    $region38: #{tpu_custom_call.1} parent=1 // pred_check
      _
    $region39: #{tpu_custom_call.1} parent=1 // pred_check_branch
      %72 = sbr.rel (0) target = $region41
    $region40: #{tpu_custom_call.1} parent=1 // pred_region
      %s74 = ssub.s32 512, 512
      %75 = vsyncadd [#allocation11], %s74
      %s76 = sshll.u32 [#allocation10], 4
      %s77 = int_to_ptr.vmem [resolvable:$true] %s76
      %82 = dma.hbm_to_vmem [thread:$0]  %s9, 512, %s77, [#allocation11], 128, 128, 8
    $region41: #{tpu_custom_call.1} parent=1 // pred_fallthru
      _
    // Predicated region
    $region42: #{tpu_custom_call.1} parent=1 // pred_check
      _
    $region43: #{tpu_custom_call.1} parent=1 // pred_check_branch
      %84 = sbr.rel (0) target = $region45
    $region44: #{tpu_custom_call.1} parent=1 // pred_region
      _
    $region45: #{tpu_custom_call.1} parent=1 // pred_fallthru
      _
    // Predicated region
    $region46: #{tpu_custom_call.1} parent=1 // pred_check
      _
    $region47: #{tpu_custom_call.1} parent=1 // pred_check_branch
      %86 = sbr.rel (0) target = $region49
    $region48: #{tpu_custom_call.1} parent=1 // pred_region
      _
    $region49: #{tpu_custom_call.1} parent=1 // pred_fallthru
      _
    // Predicated region
    $region50: #{tpu_custom_call.1} parent=1 // pred_check
      _
    $region51: #{tpu_custom_call.1} parent=1 // pred_check_branch
      %88 = sbr.rel (0) target = $region53
    $region52: #{tpu_custom_call.1} parent=1 // pred_region
      _
    $region53: #{tpu_custom_call.1} parent=1 // pred_fallthru
      _
    // Predicated region
    $region54: #{tpu_custom_call.1} parent=1 // pred_check
      _
    $region55: #{tpu_custom_call.1} parent=1 // pred_check_branch
      %90 = sbr.rel (0) target = $region57
    $region56: #{tpu_custom_call.1} parent=1 // pred_region
      _
    $region57: #{tpu_custom_call.1} parent=1 // pred_fallthru
      _
    // Predicated region
    $region58: #{tpu_custom_call.1} parent=1 // pred_check
      _
    $region59: #{tpu_custom_call.1} parent=1 // pred_check_branch
      %92 = sbr.rel (0) target = $region61
    $region60: #{tpu_custom_call.1} parent=1 // pred_region
      %93 = dma.done [#allocation5], 64
    $region61: #{tpu_custom_call.1} parent=1 // pred_fallthru
      _
    // Predicated region
    $region62: #{tpu_custom_call.1} parent=1 // pred_check
      _
    $region63: #{tpu_custom_call.1} parent=1 // pred_check_branch
      %95 = sbr.rel (0) target = $region65
    $region64: #{tpu_custom_call.1} parent=1 // pred_region
      %96 = dma.done [#allocation8], 64
    $region65: #{tpu_custom_call.1} parent=1 // pred_fallthru
      _
    // Predicated region
    $region66: #{tpu_custom_call.1} parent=1 // pred_check
      _
    $region67: #{tpu_custom_call.1} parent=1 // pred_check_branch
      %98 = sbr.rel (0) target = $region69
    $region68: #{tpu_custom_call.1} parent=1 // pred_region
      %99 = dma.done [#allocation8], 256
    $region69: #{tpu_custom_call.1} parent=1 // pred_fallthru
      _
    // Predicated region
    $region70: #{tpu_custom_call.1} parent=1 // pred_check
      _
    $region71: #{tpu_custom_call.1} parent=1 // pred_check_branch
      %101 = sbr.rel (0) target = $region73
    $region72: #{tpu_custom_call.1} parent=1 // pred_region
      %102 = dma.done [#allocation11], 512
    $region73: #{tpu_custom_call.1} parent=1 // pred_fallthru
      _
    %v103 = vld [vmem:[%s0] sm:$0xff]
    %v104 = vld [vmem:[%s0 + $0x8] sm:$0xff]
    %v105 = vld [vmem:[#allocation7] sm:$0xf]
    %v106 = vld [vmem:[%s3] sm:$0x1]
    %v108 = vlaneseq
    %v109 = vshrl.u32 %v108, 7
    %v110 = vsub.s32 0, %v109
    %v111 = vrot.slane %v106, %v110
    %vm113 = vcmask 31744
    %v115 = vsel %vm113, %v103, 0
    %v118 = vsel %vm113, %v104, 0
    %vm120 = vcmask 1043456
    %v122 = vsel %vm120, %v105, 0
    %124 = vmatprep.subr.mxu0 0.0
    %125 = vmatpush1.msra.mxu0 %v122
    %126 = vmatprep.subr.mxu0 0.0
    %127 = vmatpush1.msra.mxu0 0.0
    %128 = vmatprep.subr.mxu0 0.0
    %129 = vmatpush1.msra.mxu0 0.0
    %130 = vmatprep.subr.mxu0 0.0
    %131 = vmatpush1.msra.mxu0 0.0
    %132 = vmatprep.subr.mxu0 0.0
    %133 = vmatpush1.msra.mxu0 0.0
    %134 = vmatprep.subr.mxu0 0.0
    %135 = vmatpush1.msra.mxu0 0.0
    %136 = vmatprep.subr.mxu0 0.0
    %137 = vmatpush1.msra.mxu0 0.0
    %138 = vmatprep.subr.mxu0 0.0
    %139 = vmatpush1.msra.mxu0 0.0
    %140 = vmatprep.subr.mxu0 0.0
    %141 = vmatpush1.msra.mxu0 0.0
    %142 = vmatprep.subr.mxu0 0.0
    %143 = vmatpush1.msra.mxu0 0.0
    %144 = vmatprep.subr.mxu0 0.0
    %145 = vmatpush1.msra.mxu0 0.0
    %146 = vmatprep.subr.mxu0 0.0
    %147 = vmatpush1.msra.mxu0 0.0
    %148 = vmatprep.subr.mxu0 0.0
    %149 = vmatpush1.msra.mxu0 0.0
    %150 = vmatprep.subr.mxu0 0.0
    %151 = vmatpush1.msra.mxu0 0.0
    %152 = vmatprep.subr.mxu0 0.0
    %153 = vmatpush1.msra.mxu0 0.0
    %154 = vmatprep.subr.mxu0 0.0
    %155 = vmatpush1.msra.mxu0 0.0
    %156 = vmatprep.subr.mxu0 0.0
    %157 = vmatpush1.msra.mxu0 0.0
    %158 = vmatprep.subr.mxu0 0.0
    %159 = vmatpush1.msra.mxu0 0.0
    %160 = vmatprep.subr.mxu0 0.0
    %161 = vmatpush1.msra.mxu0 0.0
    %162 = vmatprep.subr.mxu0 0.0
    %163 = vmatpush1.msra.mxu0 0.0
    %164 = vmatprep.subr.mxu0 0.0
    %165 = vmatpush1.msra.mxu0 0.0
    %166 = vmatprep.subr.mxu0 0.0
    %167 = vmatpush1.msra.mxu0 0.0
    %168 = vmatprep.subr.mxu0 0.0
    %169 = vmatpush1.msra.mxu0 0.0
    %170 = vmatprep.subr.mxu0 0.0
    %171 = vmatpush1.msra.mxu0 0.0
    %172 = vmatprep.subr.mxu0 0.0
    %173 = vmatpush1.msra.mxu0 0.0
    %174 = vmatprep.subr.mxu0 0.0
    %175 = vmatpush1.msra.mxu0 0.0
    %176 = vmatprep.subr.mxu0 0.0
    %177 = vmatpush1.msra.mxu0 0.0
    %178 = vmatprep.subr.mxu0 0.0
    %179 = vmatpush1.msra.mxu0 0.0
    %180 = vmatprep.subr.mxu0 0.0
    %181 = vmatpush1.msra.mxu0 0.0
    %182 = vmatprep.subr.mxu0 0.0
    %183 = vmatpush1.msra.mxu0 0.0
    %184 = vmatprep.subr.mxu0 0.0
    %185 = vmatpush1.msra.mxu0 0.0
    %186 = vmatprep.subr.mxu0 0.0
    %187 = vmatpush1.msra.mxu0 0.0
    %188 = vmatprep.mubr.f32.mxu0 0.0
    %189 = vmatmul.mubr.f32.gmra.mrb[0].mxu0 %v115
    %v190 = vpop.f32.mrb[0].mxu0
    %v191 = vadd.f32 %v111, %v190
    %v192 = vpop.f32.mrb[0].mxu0
    %193 = vmatprep.mubr.f32.mxu0 0.0
    %194 = vmatmul.mubr.f32.gmra.mrb[0].mxu0 %v118
    %v195 = vpop.f32.mrb[0].mxu0
    %v196 = vadd.f32 %v111, %v195
    %v197 = vpop.f32.mrb[0].mxu0
    %198 = vdwg.mxu0
    %v199 = vld [vmem:[%s5] sm:$0xff]
    %v200 = vld [vmem:[%s5 + $0x8] sm:$0xff]
    %v201 = vld [vmem:[%s5 + $0x10] sm:$0xff]
    %v202 = vld [vmem:[%s5 + $0x18] sm:$0xff]
    %v203 = vld [vmem:[%s7] sm:$0x1]
    %v204 = vld [vmem:[#allocation9] sm:$0xff]
    %v205 = vld [vmem:[#allocation9 + $0x8] sm:$0xff]
    %v206 = vld [vmem:[%s6] sm:$0x1]
    %v208 = vlaneseq
    %v209 = vshrl.u32 %v208, 7
    %v210 = vsub.s32 0, %v209
    %v211 = vrot.slane %v206, %v210
    %vm213 = vcmask 130048
    %v215 = vsel %vm213, %v191, 0
    %v218 = vsel %vm213, %v196, 0
    %220 = vmatprep.subr.mxu0 0.0
    %221 = vmatpush1.msra.mxu0 %v204
    %222 = vmatprep.subr.mxu0 0.0
    %223 = vmatpush1.msra.mxu0 %v205
    %224 = vmatprep.subr.mxu0 0.0
    %225 = vmatpush1.msra.mxu0 0.0
    %226 = vmatprep.subr.mxu0 0.0
    %227 = vmatpush1.msra.mxu0 0.0
    %228 = vmatprep.subr.mxu0 0.0
    %229 = vmatpush1.msra.mxu0 0.0
    %230 = vmatprep.subr.mxu0 0.0
    %231 = vmatpush1.msra.mxu0 0.0
    %232 = vmatprep.subr.mxu0 0.0
    %233 = vmatpush1.msra.mxu0 0.0
    %234 = vmatprep.subr.mxu0 0.0
    %235 = vmatpush1.msra.mxu0 0.0
    %236 = vmatprep.subr.mxu0 0.0
    %237 = vmatpush1.msra.mxu0 0.0
    %238 = vmatprep.subr.mxu0 0.0
    %239 = vmatpush1.msra.mxu0 0.0
    %240 = vmatprep.subr.mxu0 0.0
    %241 = vmatpush1.msra.mxu0 0.0
    %242 = vmatprep.subr.mxu0 0.0
    %243 = vmatpush1.msra.mxu0 0.0
    %244 = vmatprep.subr.mxu0 0.0
    %245 = vmatpush1.msra.mxu0 0.0
    %246 = vmatprep.subr.mxu0 0.0
    %247 = vmatpush1.msra.mxu0 0.0
    %248 = vmatprep.subr.mxu0 0.0
    %249 = vmatpush1.msra.mxu0 0.0
    %250 = vmatprep.subr.mxu0 0.0
    %251 = vmatpush1.msra.mxu0 0.0
    %252 = vmatprep.subr.mxu0 0.0
    %253 = vmatpush1.msra.mxu0 0.0
    %254 = vmatprep.subr.mxu0 0.0
    %255 = vmatpush1.msra.mxu0 0.0
    %256 = vmatprep.subr.mxu0 0.0
    %257 = vmatpush1.msra.mxu0 0.0
    %258 = vmatprep.subr.mxu0 0.0
    %259 = vmatpush1.msra.mxu0 0.0
    %260 = vmatprep.subr.mxu0 0.0
    %261 = vmatpush1.msra.mxu0 0.0
    %262 = vmatprep.subr.mxu0 0.0
    %263 = vmatpush1.msra.mxu0 0.0
    %264 = vmatprep.subr.mxu0 0.0
    %265 = vmatpush1.msra.mxu0 0.0
    %266 = vmatprep.subr.mxu0 0.0
    %267 = vmatpush1.msra.mxu0 0.0
    %268 = vmatprep.subr.mxu0 0.0
    %269 = vmatpush1.msra.mxu0 0.0
    %270 = vmatprep.subr.mxu0 0.0
    %271 = vmatpush1.msra.mxu0 0.0
    %272 = vmatprep.subr.mxu0 0.0
    %273 = vmatpush1.msra.mxu0 0.0
    %274 = vmatprep.subr.mxu0 0.0
    %275 = vmatpush1.msra.mxu0 0.0
    %276 = vmatprep.subr.mxu0 0.0
    %277 = vmatpush1.msra.mxu0 0.0
    %278 = vmatprep.subr.mxu0 0.0
    %279 = vmatpush1.msra.mxu0 0.0
    %280 = vmatprep.subr.mxu0 0.0
    %281 = vmatpush1.msra.mxu0 0.0
    %282 = vmatprep.subr.mxu0 0.0
    %283 = vmatpush1.msra.mxu0 0.0
    %284 = vmatprep.mubr.f32.mxu0 0.0
    %285 = vmatmul.mubr.f32.gmra.mrb[0].mxu0 %v215
    %v286 = vpop.f32.mrb[0].mxu0
    %v287 = vadd.f32 %v211, %v286
    %v288 = vpop.f32.mrb[0].mxu0
    %289 = vmatprep.mubr.f32.mxu0 0.0
    %290 = vmatmul.mubr.f32.gmra.mrb[0].mxu0 %v218
    %v291 = vpop.f32.mrb[0].mxu0
    %v292 = vadd.f32 %v211, %v291
    %v293 = vpop.f32.mrb[0].mxu0
    %294 = vdwg.mxu0
    %vm295 = vcmask 785408
    %296 = vst.msk [vmem:[#allocation2] sm:$0xff] %vm295, %v287
    %297 = vst.msk [vmem:[#allocation2 + $0x8] sm:$0xff] %vm295, %v292
    %v298 = vld [vmem:[#allocation4] sm:$0x3]
    %v299 = vld [vmem:[#allocation2] sm:$0x3]
    %v301 = vlaneseq
    %v302 = vshrl.u32 %v301, 7
    %v303 = vsub.s32 0, %v302
    %v304 = vrot.slane %v203, %v303
    %vm306 = vcmask 261120
    %v308 = vsel %vm306, %v298, 0
    %310 = vmatprep.subr.mxu0 0.0
    %311 = vmatpush1.msra.mxu0 %v199
    %312 = vmatprep.subr.mxu0 0.0
    %313 = vmatpush1.msra.mxu0 %v200
    %314 = vmatprep.subr.mxu0 0.0
    %315 = vmatpush1.msra.mxu0 %v201
    %316 = vmatprep.subr.mxu0 0.0
    %317 = vmatpush1.msra.mxu0 %v202
    %318 = vmatprep.subr.mxu0 0.0
    %319 = vmatpush1.msra.mxu0 0.0
    %320 = vmatprep.subr.mxu0 0.0
    %321 = vmatpush1.msra.mxu0 0.0
    %322 = vmatprep.subr.mxu0 0.0
    %323 = vmatpush1.msra.mxu0 0.0
    %324 = vmatprep.subr.mxu0 0.0
    %325 = vmatpush1.msra.mxu0 0.0
    %326 = vmatprep.subr.mxu0 0.0
    %327 = vmatpush1.msra.mxu0 0.0
    %328 = vmatprep.subr.mxu0 0.0
    %329 = vmatpush1.msra.mxu0 0.0
    %330 = vmatprep.subr.mxu0 0.0
    %331 = vmatpush1.msra.mxu0 0.0
    %332 = vmatprep.subr.mxu0 0.0
    %333 = vmatpush1.msra.mxu0 0.0
    %334 = vmatprep.subr.mxu0 0.0
    %335 = vmatpush1.msra.mxu0 0.0
    %336 = vmatprep.subr.mxu0 0.0
    %337 = vmatpush1.msra.mxu0 0.0
    %338 = vmatprep.subr.mxu0 0.0
    %339 = vmatpush1.msra.mxu0 0.0
    %340 = vmatprep.subr.mxu0 0.0
    %341 = vmatpush1.msra.mxu0 0.0
    %342 = vmatprep.subr.mxu0 0.0
    %343 = vmatpush1.msra.mxu0 0.0
    %344 = vmatprep.subr.mxu0 0.0
    %345 = vmatpush1.msra.mxu0 0.0
    %346 = vmatprep.subr.mxu0 0.0
    %347 = vmatpush1.msra.mxu0 0.0
    %348 = vmatprep.subr.mxu0 0.0
    %349 = vmatpush1.msra.mxu0 0.0
    %350 = vmatprep.subr.mxu0 0.0
    %351 = vmatpush1.msra.mxu0 0.0
    %352 = vmatprep.subr.mxu0 0.0
    %353 = vmatpush1.msra.mxu0 0.0
    %354 = vmatprep.subr.mxu0 0.0
    %355 = vmatpush1.msra.mxu0 0.0
    %356 = vmatprep.subr.mxu0 0.0
    %357 = vmatpush1.msra.mxu0 0.0
    %358 = vmatprep.subr.mxu0 0.0
    %359 = vmatpush1.msra.mxu0 0.0
    %360 = vmatprep.subr.mxu0 0.0
    %361 = vmatpush1.msra.mxu0 0.0
    %362 = vmatprep.subr.mxu0 0.0
    %363 = vmatpush1.msra.mxu0 0.0
    %364 = vmatprep.subr.mxu0 0.0
    %365 = vmatpush1.msra.mxu0 0.0
    %366 = vmatprep.subr.mxu0 0.0
    %367 = vmatpush1.msra.mxu0 0.0
    %368 = vmatprep.subr.mxu0 0.0
    %369 = vmatpush1.msra.mxu0 0.0
    %370 = vmatprep.subr.mxu0 0.0
    %371 = vmatpush1.msra.mxu0 0.0
    %372 = vmatprep.subr.mxu0 0.0
    %373 = vmatpush1.msra.mxu0 0.0
    %374 = vmatprep.mubr.f32.mxu0 0.0
    %375 = vmatmul.mubr.f32.gmra.mrb[0].mxu0 %v308
    %v376 = vpop.f32.mrb[0].mxu0
    %v377 = vadd.f32 %v304, %v376
    %v378 = vpop.f32.mrb[0].mxu0
    %379 = vdwg.mxu0
    %v380 = vadd.f32 %v299, %v377
    %v381 = vxor.u32 %v380, 2147483648
    %v382 = vmul.f32 %v381, 1.442695
    %v383 = vpow.pop %v382
    %v384 = vadd.f32 %v383, 1.0
    %v385 = vrcp.pop %v384
    %v386 = vmul.f32 1.0, %v385
    %388 = vrot.lane.b32.xlu0 %v377, 64
    %v389 = vpop.permute.xlu0 %388
    %v391 = vmul.f32 %v386, %v389
    %393 = vrot.lane.b32.xlu0 %v391, 64
    %v394 = vpop.permute.xlu0 %393
    %v396 = vadd.f32 %v299, %v394
    %v397 = vtanh.pop %v396
    %399 = vrot.lane.b32.xlu0 %v397, 64
    %v400 = vpop.permute.xlu0 %399
    %v402 = vsub.f32 %v298, %v400
    %404 = vrot.lane.b32.xlu0 %v402, 32
    %v405 = vpop.permute.xlu0 %404
    %v407 = vmul.f32 %v386, %v405
    %409 = vrot.lane.b32.xlu0 %v407, 32
    %v410 = vpop.permute.xlu0 %409
    %v412 = vadd.f32 %v397, %v410
    %414 = vrot.lane.b32.xlu0 %v412, 64
    %v415 = vpop.permute.xlu0 %414
    %vm417 = vcmask 254976
    %418 = vst.msk [vmem:[#allocation3] sm:$0x3] %vm417, %v415
    %v419 = vld [vmem:[#allocation2 + $0x2] sm:$0x3]
    %v420 = vsel %vm306, %v415, 0
    %422 = vmatprep.subr.mxu0 0.0
    %423 = vmatpush1.msra.mxu0 %v199
    %424 = vmatprep.subr.mxu0 0.0
    %425 = vmatpush1.msra.mxu0 %v200
    %426 = vmatprep.subr.mxu0 0.0
    %427 = vmatpush1.msra.mxu0 %v201
    %428 = vmatprep.subr.mxu0 0.0
    %429 = vmatpush1.msra.mxu0 %v202
    %430 = vmatprep.subr.mxu0 0.0
    %431 = vmatpush1.msra.mxu0 0.0
    %432 = vmatprep.subr.mxu0 0.0
    %433 = vmatpush1.msra.mxu0 0.0
    %434 = vmatprep.subr.mxu0 0.0
    %435 = vmatpush1.msra.mxu0 0.0
    %436 = vmatprep.subr.mxu0 0.0
    %437 = vmatpush1.msra.mxu0 0.0
    %438 = vmatprep.subr.mxu0 0.0
    %439 = vmatpush1.msra.mxu0 0.0
    %440 = vmatprep.subr.mxu0 0.0
    %441 = vmatpush1.msra.mxu0 0.0
    %442 = vmatprep.subr.mxu0 0.0
    %443 = vmatpush1.msra.mxu0 0.0
    %444 = vmatprep.subr.mxu0 0.0
    %445 = vmatpush1.msra.mxu0 0.0
    %446 = vmatprep.subr.mxu0 0.0
    %447 = vmatpush1.msra.mxu0 0.0
    %448 = vmatprep.subr.mxu0 0.0
    %449 = vmatpush1.msra.mxu0 0.0
    %450 = vmatprep.subr.mxu0 0.0
    %451 = vmatpush1.msra.mxu0 0.0
    %452 = vmatprep.subr.mxu0 0.0
    %453 = vmatpush1.msra.mxu0 0.0
    %454 = vmatprep.subr.mxu0 0.0
    %455 = vmatpush1.msra.mxu0 0.0
    %456 = vmatprep.subr.mxu0 0.0
    %457 = vmatpush1.msra.mxu0 0.0
    %458 = vmatprep.subr.mxu0 0.0
    %459 = vmatpush1.msra.mxu0 0.0
    %460 = vmatprep.subr.mxu0 0.0
    %461 = vmatpush1.msra.mxu0 0.0
    %462 = vmatprep.subr.mxu0 0.0
    %463 = vmatpush1.msra.mxu0 0.0
    %464 = vmatprep.subr.mxu0 0.0
    %465 = vmatpush1.msra.mxu0 0.0
    %466 = vmatprep.subr.mxu0 0.0
    %467 = vmatpush1.msra.mxu0 0.0
    %468 = vmatprep.subr.mxu0 0.0
    %469 = vmatpush1.msra.mxu0 0.0
    %470 = vmatprep.subr.mxu0 0.0
    %471 = vmatpush1.msra.mxu0 0.0
    %472 = vmatprep.subr.mxu0 0.0
    %473 = vmatpush1.msra.mxu0 0.0
    %474 = vmatprep.subr.mxu0 0.0
    %475 = vmatpush1.msra.mxu0 0.0
    %476 = vmatprep.subr.mxu0 0.0
    %477 = vmatpush1.msra.mxu0 0.0
    %478 = vmatprep.subr.mxu0 0.0
    %479 = vmatpush1.msra.mxu0 0.0
    %480 = vmatprep.subr.mxu0 0.0
    %481 = vmatpush1.msra.mxu0 0.0
    %482 = vmatprep.subr.mxu0 0.0
    %483 = vmatpush1.msra.mxu0 0.0
    %484 = vmatprep.subr.mxu0 0.0
    %485 = vmatpush1.msra.mxu0 0.0
    %486 = vmatprep.mubr.f32.mxu0 0.0
    %487 = vmatmul.mubr.f32.gmra.mrb[0].mxu0 %v420
    %v488 = vpop.f32.mrb[0].mxu0
    %v489 = vadd.f32 %v304, %v488
    %v490 = vpop.f32.mrb[0].mxu0
    %491 = vdwg.mxu0
    %v492 = vadd.f32 %v419, %v489
    %v493 = vxor.u32 %v492, 2147483648
    %v494 = vmul.f32 %v493, 1.442695
    %v495 = vpow.pop %v494
    %v496 = vadd.f32 %v495, 1.0
    %v497 = vrcp.pop %v496
    %v498 = vmul.f32 1.0, %v497
    %500 = vrot.lane.b32.xlu0 %v489, 64
    %v501 = vpop.permute.xlu0 %500
    %v503 = vmul.f32 %v498, %v501
    %505 = vrot.lane.b32.xlu0 %v503, 64
    %v506 = vpop.permute.xlu0 %505
    %v508 = vadd.f32 %v419, %v506
    %v509 = vtanh.pop %v508
    %v510 = vsub.f32 %v412, %v509
    %512 = vrot.lane.b32.xlu0 %v510, 96
    %v513 = vpop.permute.xlu0 %512
    %v515 = vmul.f32 %v498, %v513
    %517 = vrot.lane.b32.xlu0 %v515, 32
    %v518 = vpop.permute.xlu0 %517
    %v520 = vadd.f32 %v509, %v518
    %522 = vrot.lane.b32.xlu0 %v520, 64
    %v523 = vpop.permute.xlu0 %522
    %525 = vst.msk [vmem:[#allocation3 + $0x2] sm:$0x3] %vm417, %v523
    %v526 = vld [vmem:[#allocation2 + $0x4] sm:$0x3]
    %v527 = vsel %vm306, %v523, 0
    %529 = vmatprep.subr.mxu0 0.0
    %530 = vmatpush1.msra.mxu0 %v199
    %531 = vmatprep.subr.mxu0 0.0
    %532 = vmatpush1.msra.mxu0 %v200
    %533 = vmatprep.subr.mxu0 0.0
    %534 = vmatpush1.msra.mxu0 %v201
    %535 = vmatprep.subr.mxu0 0.0
    %536 = vmatpush1.msra.mxu0 %v202
    %537 = vmatprep.subr.mxu0 0.0
    %538 = vmatpush1.msra.mxu0 0.0
    %539 = vmatprep.subr.mxu0 0.0
    %540 = vmatpush1.msra.mxu0 0.0
    %541 = vmatprep.subr.mxu0 0.0
    %542 = vmatpush1.msra.mxu0 0.0
    %543 = vmatprep.subr.mxu0 0.0
    %544 = vmatpush1.msra.mxu0 0.0
    %545 = vmatprep.subr.mxu0 0.0
    %546 = vmatpush1.msra.mxu0 0.0
    %547 = vmatprep.subr.mxu0 0.0
    %548 = vmatpush1.msra.mxu0 0.0
    %549 = vmatprep.subr.mxu0 0.0
    %550 = vmatpush1.msra.mxu0 0.0
    %551 = vmatprep.subr.mxu0 0.0
    %552 = vmatpush1.msra.mxu0 0.0
    %553 = vmatprep.subr.mxu0 0.0
    %554 = vmatpush1.msra.mxu0 0.0
    %555 = vmatprep.subr.mxu0 0.0
    %556 = vmatpush1.msra.mxu0 0.0
    %557 = vmatprep.subr.mxu0 0.0
    %558 = vmatpush1.msra.mxu0 0.0
    %559 = vmatprep.subr.mxu0 0.0
    %560 = vmatpush1.msra.mxu0 0.0
    %561 = vmatprep.subr.mxu0 0.0
    %562 = vmatpush1.msra.mxu0 0.0
    %563 = vmatprep.subr.mxu0 0.0
    %564 = vmatpush1.msra.mxu0 0.0
    %565 = vmatprep.subr.mxu0 0.0
    %566 = vmatpush1.msra.mxu0 0.0
    %567 = vmatprep.subr.mxu0 0.0
    %568 = vmatpush1.msra.mxu0 0.0
    %569 = vmatprep.subr.mxu0 0.0
    %570 = vmatpush1.msra.mxu0 0.0
    %571 = vmatprep.subr.mxu0 0.0
    %572 = vmatpush1.msra.mxu0 0.0
    %573 = vmatprep.subr.mxu0 0.0
    %574 = vmatpush1.msra.mxu0 0.0
    %575 = vmatprep.subr.mxu0 0.0
    %576 = vmatpush1.msra.mxu0 0.0
    %577 = vmatprep.subr.mxu0 0.0
    %578 = vmatpush1.msra.mxu0 0.0
    %579 = vmatprep.subr.mxu0 0.0
    %580 = vmatpush1.msra.mxu0 0.0
    %581 = vmatprep.subr.mxu0 0.0
    %582 = vmatpush1.msra.mxu0 0.0
    %583 = vmatprep.subr.mxu0 0.0
    %584 = vmatpush1.msra.mxu0 0.0
    %585 = vmatprep.subr.mxu0 0.0
    %586 = vmatpush1.msra.mxu0 0.0
    %587 = vmatprep.subr.mxu0 0.0
    %588 = vmatpush1.msra.mxu0 0.0
    %589 = vmatprep.subr.mxu0 0.0
    %590 = vmatpush1.msra.mxu0 0.0
    %591 = vmatprep.subr.mxu0 0.0
    %592 = vmatpush1.msra.mxu0 0.0
    %593 = vmatprep.mubr.f32.mxu0 0.0
    %594 = vmatmul.mubr.f32.gmra.mrb[0].mxu0 %v527
    %v595 = vpop.f32.mrb[0].mxu0
    %v596 = vadd.f32 %v304, %v595
    %v597 = vpop.f32.mrb[0].mxu0
    %598 = vdwg.mxu0
    %v599 = vadd.f32 %v526, %v596
    %v600 = vxor.u32 %v599, 2147483648
    %v601 = vmul.f32 %v600, 1.442695
    %v602 = vpow.pop %v601
    %v603 = vadd.f32 %v602, 1.0
    %v604 = vrcp.pop %v603
    %v605 = vmul.f32 1.0, %v604
    %607 = vrot.lane.b32.xlu0 %v596, 64
    %v608 = vpop.permute.xlu0 %607
    %v610 = vmul.f32 %v605, %v608
    %612 = vrot.lane.b32.xlu0 %v610, 64
    %v613 = vpop.permute.xlu0 %612
    %v615 = vadd.f32 %v526, %v613
    %v616 = vtanh.pop %v615
    %v617 = vsub.f32 %v520, %v616
    %619 = vrot.lane.b32.xlu0 %v617, 96
    %v620 = vpop.permute.xlu0 %619
    %v622 = vmul.f32 %v605, %v620
    %624 = vrot.lane.b32.xlu0 %v622, 32
    %v625 = vpop.permute.xlu0 %624
    %v627 = vadd.f32 %v616, %v625
    %629 = vrot.lane.b32.xlu0 %v627, 64
    %v630 = vpop.permute.xlu0 %629
    %632 = vst.msk [vmem:[#allocation3 + $0x4] sm:$0x3] %vm417, %v630
    %v633 = vld [vmem:[#allocation2 + $0x6] sm:$0x3]
    %v634 = vsel %vm306, %v630, 0
    %636 = vmatprep.subr.mxu0 0.0
    %637 = vmatpush1.msra.mxu0 %v199
    %638 = vmatprep.subr.mxu0 0.0
    %639 = vmatpush1.msra.mxu0 %v200
    %640 = vmatprep.subr.mxu0 0.0
    %641 = vmatpush1.msra.mxu0 %v201
    %642 = vmatprep.subr.mxu0 0.0
    %643 = vmatpush1.msra.mxu0 %v202
    %644 = vmatprep.subr.mxu0 0.0
    %645 = vmatpush1.msra.mxu0 0.0
    %646 = vmatprep.subr.mxu0 0.0
    %647 = vmatpush1.msra.mxu0 0.0
    %648 = vmatprep.subr.mxu0 0.0
    %649 = vmatpush1.msra.mxu0 0.0
    %650 = vmatprep.subr.mxu0 0.0
    %651 = vmatpush1.msra.mxu0 0.0
    %652 = vmatprep.subr.mxu0 0.0
    %653 = vmatpush1.msra.mxu0 0.0
    %654 = vmatprep.subr.mxu0 0.0
    %655 = vmatpush1.msra.mxu0 0.0
    %656 = vmatprep.subr.mxu0 0.0
    %657 = vmatpush1.msra.mxu0 0.0
    %658 = vmatprep.subr.mxu0 0.0
    %659 = vmatpush1.msra.mxu0 0.0
    %660 = vmatprep.subr.mxu0 0.0
    %661 = vmatpush1.msra.mxu0 0.0
    %662 = vmatprep.subr.mxu0 0.0
    %663 = vmatpush1.msra.mxu0 0.0
    %664 = vmatprep.subr.mxu0 0.0
    %665 = vmatpush1.msra.mxu0 0.0
    %666 = vmatprep.subr.mxu0 0.0
    %667 = vmatpush1.msra.mxu0 0.0
    %668 = vmatprep.subr.mxu0 0.0
    %669 = vmatpush1.msra.mxu0 0.0
    %670 = vmatprep.subr.mxu0 0.0
    %671 = vmatpush1.msra.mxu0 0.0
    %672 = vmatprep.subr.mxu0 0.0
    %673 = vmatpush1.msra.mxu0 0.0
    %674 = vmatprep.subr.mxu0 0.0
    %675 = vmatpush1.msra.mxu0 0.0
    %676 = vmatprep.subr.mxu0 0.0
    %677 = vmatpush1.msra.mxu0 0.0
    %678 = vmatprep.subr.mxu0 0.0
    %679 = vmatpush1.msra.mxu0 0.0
    %680 = vmatprep.subr.mxu0 0.0
    %681 = vmatpush1.msra.mxu0 0.0
    %682 = vmatprep.subr.mxu0 0.0
    %683 = vmatpush1.msra.mxu0 0.0
    %684 = vmatprep.subr.mxu0 0.0
    %685 = vmatpush1.msra.mxu0 0.0
    %686 = vmatprep.subr.mxu0 0.0
    %687 = vmatpush1.msra.mxu0 0.0
    %688 = vmatprep.subr.mxu0 0.0
    %689 = vmatpush1.msra.mxu0 0.0
    %690 = vmatprep.subr.mxu0 0.0
    %691 = vmatpush1.msra.mxu0 0.0
    %692 = vmatprep.subr.mxu0 0.0
    %693 = vmatpush1.msra.mxu0 0.0
    %694 = vmatprep.subr.mxu0 0.0
    %695 = vmatpush1.msra.mxu0 0.0
    %696 = vmatprep.subr.mxu0 0.0
    %697 = vmatpush1.msra.mxu0 0.0
    %698 = vmatprep.subr.mxu0 0.0
    %699 = vmatpush1.msra.mxu0 0.0
    %700 = vmatprep.mubr.f32.mxu0 0.0
    %701 = vmatmul.mubr.f32.gmra.mrb[0].mxu0 %v634
    %v702 = vpop.f32.mrb[0].mxu0
    %v703 = vadd.f32 %v304, %v702
    %v704 = vpop.f32.mrb[0].mxu0
    %705 = vdwg.mxu0
    %v706 = vadd.f32 %v633, %v703
    %v707 = vxor.u32 %v706, 2147483648
    %v708 = vmul.f32 %v707, 1.442695
    %v709 = vpow.pop %v708
    %v710 = vadd.f32 %v709, 1.0
    %v711 = vrcp.pop %v710
    %v712 = vmul.f32 1.0, %v711
    %714 = vrot.lane.b32.xlu0 %v703, 64
    %v715 = vpop.permute.xlu0 %714
    %v717 = vmul.f32 %v712, %v715
    %719 = vrot.lane.b32.xlu0 %v717, 64
    %v720 = vpop.permute.xlu0 %719
    %v722 = vadd.f32 %v633, %v720
    %v723 = vtanh.pop %v722
    %v724 = vsub.f32 %v627, %v723
    %726 = vrot.lane.b32.xlu0 %v724, 96
    %v727 = vpop.permute.xlu0 %726
    %v729 = vmul.f32 %v712, %v727
    %731 = vrot.lane.b32.xlu0 %v729, 32
    %v732 = vpop.permute.xlu0 %731
    %v734 = vadd.f32 %v723, %v732
    %736 = vrot.lane.b32.xlu0 %v734, 64
    %v737 = vpop.permute.xlu0 %736
    %739 = vst.msk [vmem:[#allocation3 + $0x6] sm:$0x3] %vm417, %v737
    %v740 = vld [vmem:[#allocation2 + $0x8] sm:$0x3]
    %v741 = vsel %vm306, %v737, 0
    %743 = vmatprep.subr.mxu0 0.0
    %744 = vmatpush1.msra.mxu0 %v199
    %745 = vmatprep.subr.mxu0 0.0
    %746 = vmatpush1.msra.mxu0 %v200
    %747 = vmatprep.subr.mxu0 0.0
    %748 = vmatpush1.msra.mxu0 %v201
    %749 = vmatprep.subr.mxu0 0.0
    %750 = vmatpush1.msra.mxu0 %v202
    %751 = vmatprep.subr.mxu0 0.0
    %752 = vmatpush1.msra.mxu0 0.0
    %753 = vmatprep.subr.mxu0 0.0
    %754 = vmatpush1.msra.mxu0 0.0
    %755 = vmatprep.subr.mxu0 0.0
    %756 = vmatpush1.msra.mxu0 0.0
    %757 = vmatprep.subr.mxu0 0.0
    %758 = vmatpush1.msra.mxu0 0.0
    %759 = vmatprep.subr.mxu0 0.0
    %760 = vmatpush1.msra.mxu0 0.0
    %761 = vmatprep.subr.mxu0 0.0
    %762 = vmatpush1.msra.mxu0 0.0
    %763 = vmatprep.subr.mxu0 0.0
    %764 = vmatpush1.msra.mxu0 0.0
    %765 = vmatprep.subr.mxu0 0.0
    %766 = vmatpush1.msra.mxu0 0.0
    %767 = vmatprep.subr.mxu0 0.0
    %768 = vmatpush1.msra.mxu0 0.0
    %769 = vmatprep.subr.mxu0 0.0
    %770 = vmatpush1.msra.mxu0 0.0
    %771 = vmatprep.subr.mxu0 0.0
    %772 = vmatpush1.msra.mxu0 0.0
    %773 = vmatprep.subr.mxu0 0.0
    %774 = vmatpush1.msra.mxu0 0.0
    %775 = vmatprep.subr.mxu0 0.0
    %776 = vmatpush1.msra.mxu0 0.0
    %777 = vmatprep.subr.mxu0 0.0
    %778 = vmatpush1.msra.mxu0 0.0
    %779 = vmatprep.subr.mxu0 0.0
    %780 = vmatpush1.msra.mxu0 0.0
    %781 = vmatprep.subr.mxu0 0.0
    %782 = vmatpush1.msra.mxu0 0.0
    %783 = vmatprep.subr.mxu0 0.0
    %784 = vmatpush1.msra.mxu0 0.0
    %785 = vmatprep.subr.mxu0 0.0
    %786 = vmatpush1.msra.mxu0 0.0
    %787 = vmatprep.subr.mxu0 0.0
    %788 = vmatpush1.msra.mxu0 0.0
    %789 = vmatprep.subr.mxu0 0.0
    %790 = vmatpush1.msra.mxu0 0.0
    %791 = vmatprep.subr.mxu0 0.0
    %792 = vmatpush1.msra.mxu0 0.0
    %793 = vmatprep.subr.mxu0 0.0
    %794 = vmatpush1.msra.mxu0 0.0
    %795 = vmatprep.subr.mxu0 0.0
    %796 = vmatpush1.msra.mxu0 0.0
    %797 = vmatprep.subr.mxu0 0.0
    %798 = vmatpush1.msra.mxu0 0.0
    %799 = vmatprep.subr.mxu0 0.0
    %800 = vmatpush1.msra.mxu0 0.0
    %801 = vmatprep.subr.mxu0 0.0
    %802 = vmatpush1.msra.mxu0 0.0
    %803 = vmatprep.subr.mxu0 0.0
    %804 = vmatpush1.msra.mxu0 0.0
    %805 = vmatprep.subr.mxu0 0.0
    %806 = vmatpush1.msra.mxu0 0.0
    %807 = vmatprep.mubr.f32.mxu0 0.0
    %808 = vmatmul.mubr.f32.gmra.mrb[0].mxu0 %v741
    %v809 = vpop.f32.mrb[0].mxu0
    %v810 = vadd.f32 %v304, %v809
    %v811 = vpop.f32.mrb[0].mxu0
    %812 = vdwg.mxu0
    %v813 = vadd.f32 %v740, %v810
    %v814 = vxor.u32 %v813, 2147483648
    %v815 = vmul.f32 %v814, 1.442695
    %v816 = vpow.pop %v815
    %v817 = vadd.f32 %v816, 1.0
    %v818 = vrcp.pop %v817
    %v819 = vmul.f32 1.0, %v818
    %821 = vrot.lane.b32.xlu0 %v810, 64
    %v822 = vpop.permute.xlu0 %821
    %v824 = vmul.f32 %v819, %v822
    %826 = vrot.lane.b32.xlu0 %v824, 64
    %v827 = vpop.permute.xlu0 %826
    %v829 = vadd.f32 %v740, %v827
    %v830 = vtanh.pop %v829
    %v831 = vsub.f32 %v734, %v830
    %833 = vrot.lane.b32.xlu0 %v831, 96
    %v834 = vpop.permute.xlu0 %833
    %v836 = vmul.f32 %v819, %v834
    %838 = vrot.lane.b32.xlu0 %v836, 32
    %v839 = vpop.permute.xlu0 %838
    %v841 = vadd.f32 %v830, %v839
    %843 = vrot.lane.b32.xlu0 %v841, 64
    %v844 = vpop.permute.xlu0 %843
    %846 = vst.msk [vmem:[#allocation3 + $0x8] sm:$0x3] %vm417, %v844
    %v847 = vld [vmem:[#allocation2 + $0xa] sm:$0x3]
    %v848 = vsel %vm306, %v844, 0
    %850 = vmatprep.subr.mxu0 0.0
    %851 = vmatpush1.msra.mxu0 %v199
    %852 = vmatprep.subr.mxu0 0.0
    %853 = vmatpush1.msra.mxu0 %v200
    %854 = vmatprep.subr.mxu0 0.0
    %855 = vmatpush1.msra.mxu0 %v201
    %856 = vmatprep.subr.mxu0 0.0
    %857 = vmatpush1.msra.mxu0 %v202
    %858 = vmatprep.subr.mxu0 0.0
    %859 = vmatpush1.msra.mxu0 0.0
    %860 = vmatprep.subr.mxu0 0.0
    %861 = vmatpush1.msra.mxu0 0.0
    %862 = vmatprep.subr.mxu0 0.0
    %863 = vmatpush1.msra.mxu0 0.0
    %864 = vmatprep.subr.mxu0 0.0
    %865 = vmatpush1.msra.mxu0 0.0
    %866 = vmatprep.subr.mxu0 0.0
    %867 = vmatpush1.msra.mxu0 0.0
    %868 = vmatprep.subr.mxu0 0.0
    %869 = vmatpush1.msra.mxu0 0.0
    %870 = vmatprep.subr.mxu0 0.0
    %871 = vmatpush1.msra.mxu0 0.0
    %872 = vmatprep.subr.mxu0 0.0
    %873 = vmatpush1.msra.mxu0 0.0
    %874 = vmatprep.subr.mxu0 0.0
    %875 = vmatpush1.msra.mxu0 0.0
    %876 = vmatprep.subr.mxu0 0.0
    %877 = vmatpush1.msra.mxu0 0.0
    %878 = vmatprep.subr.mxu0 0.0
    %879 = vmatpush1.msra.mxu0 0.0
    %880 = vmatprep.subr.mxu0 0.0
    %881 = vmatpush1.msra.mxu0 0.0
    %882 = vmatprep.subr.mxu0 0.0
    %883 = vmatpush1.msra.mxu0 0.0
    %884 = vmatprep.subr.mxu0 0.0
    %885 = vmatpush1.msra.mxu0 0.0
    %886 = vmatprep.subr.mxu0 0.0
    %887 = vmatpush1.msra.mxu0 0.0
    %888 = vmatprep.subr.mxu0 0.0
    %889 = vmatpush1.msra.mxu0 0.0
    %890 = vmatprep.subr.mxu0 0.0
    %891 = vmatpush1.msra.mxu0 0.0
    %892 = vmatprep.subr.mxu0 0.0
    %893 = vmatpush1.msra.mxu0 0.0
    %894 = vmatprep.subr.mxu0 0.0
    %895 = vmatpush1.msra.mxu0 0.0
    %896 = vmatprep.subr.mxu0 0.0
    %897 = vmatpush1.msra.mxu0 0.0
    %898 = vmatprep.subr.mxu0 0.0
    %899 = vmatpush1.msra.mxu0 0.0
    %900 = vmatprep.subr.mxu0 0.0
    %901 = vmatpush1.msra.mxu0 0.0
    %902 = vmatprep.subr.mxu0 0.0
    %903 = vmatpush1.msra.mxu0 0.0
    %904 = vmatprep.subr.mxu0 0.0
    %905 = vmatpush1.msra.mxu0 0.0
    %906 = vmatprep.subr.mxu0 0.0
    %907 = vmatpush1.msra.mxu0 0.0
    %908 = vmatprep.subr.mxu0 0.0
    %909 = vmatpush1.msra.mxu0 0.0
    %910 = vmatprep.subr.mxu0 0.0
    %911 = vmatpush1.msra.mxu0 0.0
    %912 = vmatprep.subr.mxu0 0.0
    %913 = vmatpush1.msra.mxu0 0.0
    %914 = vmatprep.mubr.f32.mxu0 0.0
    %915 = vmatmul.mubr.f32.gmra.mrb[0].mxu0 %v848
    %v916 = vpop.f32.mrb[0].mxu0
    %v917 = vadd.f32 %v304, %v916
    %v918 = vpop.f32.mrb[0].mxu0
    %919 = vdwg.mxu0
    %v920 = vadd.f32 %v847, %v917
    %v921 = vxor.u32 %v920, 2147483648
    %v922 = vmul.f32 %v921, 1.442695
    %v923 = vpow.pop %v922
    %v924 = vadd.f32 %v923, 1.0
    %v925 = vrcp.pop %v924
    %v926 = vmul.f32 1.0, %v925
    %928 = vrot.lane.b32.xlu0 %v917, 64
    %v929 = vpop.permute.xlu0 %928
    %v931 = vmul.f32 %v926, %v929
    %933 = vrot.lane.b32.xlu0 %v931, 64
    %v934 = vpop.permute.xlu0 %933
    %v936 = vadd.f32 %v847, %v934
    %v937 = vtanh.pop %v936
    %v938 = vsub.f32 %v841, %v937
    %940 = vrot.lane.b32.xlu0 %v938, 96
    %v941 = vpop.permute.xlu0 %940
    %v943 = vmul.f32 %v926, %v941
    %945 = vrot.lane.b32.xlu0 %v943, 32
    %v946 = vpop.permute.xlu0 %945
    %v948 = vadd.f32 %v937, %v946
    %950 = vrot.lane.b32.xlu0 %v948, 64
    %v951 = vpop.permute.xlu0 %950
    %953 = vst.msk [vmem:[#allocation3 + $0xa] sm:$0x3] %vm417, %v951
    %v954 = vld [vmem:[#allocation2 + $0xc] sm:$0x3]
    %v955 = vsel %vm306, %v951, 0
    %957 = vmatprep.subr.mxu0 0.0
    %958 = vmatpush1.msra.mxu0 %v199
    %959 = vmatprep.subr.mxu0 0.0
    %960 = vmatpush1.msra.mxu0 %v200
    %961 = vmatprep.subr.mxu0 0.0
    %962 = vmatpush1.msra.mxu0 %v201
    %963 = vmatprep.subr.mxu0 0.0
    %964 = vmatpush1.msra.mxu0 %v202
    %965 = vmatprep.subr.mxu0 0.0
    %966 = vmatpush1.msra.mxu0 0.0
    %967 = vmatprep.subr.mxu0 0.0
    %968 = vmatpush1.msra.mxu0 0.0
    %969 = vmatprep.subr.mxu0 0.0
    %970 = vmatpush1.msra.mxu0 0.0
    %971 = vmatprep.subr.mxu0 0.0
    %972 = vmatpush1.msra.mxu0 0.0
    %973 = vmatprep.subr.mxu0 0.0
    %974 = vmatpush1.msra.mxu0 0.0
    %975 = vmatprep.subr.mxu0 0.0
    %976 = vmatpush1.msra.mxu0 0.0
    %977 = vmatprep.subr.mxu0 0.0
    %978 = vmatpush1.msra.mxu0 0.0
    %979 = vmatprep.subr.mxu0 0.0
    %980 = vmatpush1.msra.mxu0 0.0
    %981 = vmatprep.subr.mxu0 0.0
    %982 = vmatpush1.msra.mxu0 0.0
    %983 = vmatprep.subr.mxu0 0.0
    %984 = vmatpush1.msra.mxu0 0.0
    %985 = vmatprep.subr.mxu0 0.0
    %986 = vmatpush1.msra.mxu0 0.0
    %987 = vmatprep.subr.mxu0 0.0
    %988 = vmatpush1.msra.mxu0 0.0
    %989 = vmatprep.subr.mxu0 0.0
    %990 = vmatpush1.msra.mxu0 0.0
    %991 = vmatprep.subr.mxu0 0.0
    %992 = vmatpush1.msra.mxu0 0.0
    %993 = vmatprep.subr.mxu0 0.0
    %994 = vmatpush1.msra.mxu0 0.0
    %995 = vmatprep.subr.mxu0 0.0
    %996 = vmatpush1.msra.mxu0 0.0
    %997 = vmatprep.subr.mxu0 0.0
    %998 = vmatpush1.msra.mxu0 0.0
    %999 = vmatprep.subr.mxu0 0.0
    %1000 = vmatpush1.msra.mxu0 0.0
    %1001 = vmatprep.subr.mxu0 0.0
    %1002 = vmatpush1.msra.mxu0 0.0
    %1003 = vmatprep.subr.mxu0 0.0
    %1004 = vmatpush1.msra.mxu0 0.0
    %1005 = vmatprep.subr.mxu0 0.0
    %1006 = vmatpush1.msra.mxu0 0.0
    %1007 = vmatprep.subr.mxu0 0.0
    %1008 = vmatpush1.msra.mxu0 0.0
    %1009 = vmatprep.subr.mxu0 0.0
    %1010 = vmatpush1.msra.mxu0 0.0
    %1011 = vmatprep.subr.mxu0 0.0
    %1012 = vmatpush1.msra.mxu0 0.0
    %1013 = vmatprep.subr.mxu0 0.0
    %1014 = vmatpush1.msra.mxu0 0.0
    %1015 = vmatprep.subr.mxu0 0.0
    %1016 = vmatpush1.msra.mxu0 0.0
    %1017 = vmatprep.subr.mxu0 0.0
    %1018 = vmatpush1.msra.mxu0 0.0
    %1019 = vmatprep.subr.mxu0 0.0
    %1020 = vmatpush1.msra.mxu0 0.0
    %1021 = vmatprep.mubr.f32.mxu0 0.0
    %1022 = vmatmul.mubr.f32.gmra.mrb[0].mxu0 %v955
    %v1023 = vpop.f32.mrb[0].mxu0
    %v1024 = vadd.f32 %v304, %v1023
    %v1025 = vpop.f32.mrb[0].mxu0
    %1026 = vdwg.mxu0
    %v1027 = vadd.f32 %v954, %v1024
    %v1028 = vxor.u32 %v1027, 2147483648
    %v1029 = vmul.f32 %v1028, 1.442695
    %v1030 = vpow.pop %v1029
    %v1031 = vadd.f32 %v1030, 1.0
    %v1032 = vrcp.pop %v1031
    %v1033 = vmul.f32 1.0, %v1032
    %1035 = vrot.lane.b32.xlu0 %v1024, 64
    %v1036 = vpop.permute.xlu0 %1035
    %v1038 = vmul.f32 %v1033, %v1036
    %1040 = vrot.lane.b32.xlu0 %v1038, 64
    %v1041 = vpop.permute.xlu0 %1040
    %v1043 = vadd.f32 %v954, %v1041
    %v1044 = vtanh.pop %v1043
    %v1045 = vsub.f32 %v948, %v1044
    %1047 = vrot.lane.b32.xlu0 %v1045, 96
    %v1048 = vpop.permute.xlu0 %1047
    %v1050 = vmul.f32 %v1033, %v1048
    %1052 = vrot.lane.b32.xlu0 %v1050, 32
    %v1053 = vpop.permute.xlu0 %1052
    %v1055 = vadd.f32 %v1044, %v1053
    %1057 = vrot.lane.b32.xlu0 %v1055, 64
    %v1058 = vpop.permute.xlu0 %1057
    %1060 = vst.msk [vmem:[#allocation3 + $0xc] sm:$0x3] %vm417, %v1058
    %v1061 = vld [vmem:[#allocation2 + $0xe] sm:$0x3]
    %v1062 = vsel %vm306, %v1058, 0
    %1064 = vmatprep.subr.mxu0 0.0
    %1065 = vmatpush1.msra.mxu0 %v199
    %1066 = vmatprep.subr.mxu0 0.0
    %1067 = vmatpush1.msra.mxu0 %v200
    %1068 = vmatprep.subr.mxu0 0.0
    %1069 = vmatpush1.msra.mxu0 %v201
    %1070 = vmatprep.subr.mxu0 0.0
    %1071 = vmatpush1.msra.mxu0 %v202
    %1072 = vmatprep.subr.mxu0 0.0
    %1073 = vmatpush1.msra.mxu0 0.0
    %1074 = vmatprep.subr.mxu0 0.0
    %1075 = vmatpush1.msra.mxu0 0.0
    %1076 = vmatprep.subr.mxu0 0.0
    %1077 = vmatpush1.msra.mxu0 0.0
    %1078 = vmatprep.subr.mxu0 0.0
    %1079 = vmatpush1.msra.mxu0 0.0
    %1080 = vmatprep.subr.mxu0 0.0
    %1081 = vmatpush1.msra.mxu0 0.0
    %1082 = vmatprep.subr.mxu0 0.0
    %1083 = vmatpush1.msra.mxu0 0.0
    %1084 = vmatprep.subr.mxu0 0.0
    %1085 = vmatpush1.msra.mxu0 0.0
    %1086 = vmatprep.subr.mxu0 0.0
    %1087 = vmatpush1.msra.mxu0 0.0
    %1088 = vmatprep.subr.mxu0 0.0
    %1089 = vmatpush1.msra.mxu0 0.0
    %1090 = vmatprep.subr.mxu0 0.0
    %1091 = vmatpush1.msra.mxu0 0.0
    %1092 = vmatprep.subr.mxu0 0.0
    %1093 = vmatpush1.msra.mxu0 0.0
    %1094 = vmatprep.subr.mxu0 0.0
    %1095 = vmatpush1.msra.mxu0 0.0
    %1096 = vmatprep.subr.mxu0 0.0
    %1097 = vmatpush1.msra.mxu0 0.0
    %1098 = vmatprep.subr.mxu0 0.0
    %1099 = vmatpush1.msra.mxu0 0.0
    %1100 = vmatprep.subr.mxu0 0.0
    %1101 = vmatpush1.msra.mxu0 0.0
    %1102 = vmatprep.subr.mxu0 0.0
    %1103 = vmatpush1.msra.mxu0 0.0
    %1104 = vmatprep.subr.mxu0 0.0
    %1105 = vmatpush1.msra.mxu0 0.0
    %1106 = vmatprep.subr.mxu0 0.0
    %1107 = vmatpush1.msra.mxu0 0.0
    %1108 = vmatprep.subr.mxu0 0.0
    %1109 = vmatpush1.msra.mxu0 0.0
    %1110 = vmatprep.subr.mxu0 0.0
    %1111 = vmatpush1.msra.mxu0 0.0
    %1112 = vmatprep.subr.mxu0 0.0
    %1113 = vmatpush1.msra.mxu0 0.0
    %1114 = vmatprep.subr.mxu0 0.0
    %1115 = vmatpush1.msra.mxu0 0.0
    %1116 = vmatprep.subr.mxu0 0.0
    %1117 = vmatpush1.msra.mxu0 0.0
    %1118 = vmatprep.subr.mxu0 0.0
    %1119 = vmatpush1.msra.mxu0 0.0
    %1120 = vmatprep.subr.mxu0 0.0
    %1121 = vmatpush1.msra.mxu0 0.0
    %1122 = vmatprep.subr.mxu0 0.0
    %1123 = vmatpush1.msra.mxu0 0.0
    %1124 = vmatprep.subr.mxu0 0.0
    %1125 = vmatpush1.msra.mxu0 0.0
    %1126 = vmatprep.subr.mxu0 0.0
    %1127 = vmatpush1.msra.mxu0 0.0
    %1128 = vmatprep.mubr.f32.mxu0 0.0
    %1129 = vmatmul.mubr.f32.gmra.mrb[0].mxu0 %v1062
    %v1130 = vpop.f32.mrb[0].mxu0
    %v1131 = vadd.f32 %v304, %v1130
    %v1132 = vpop.f32.mrb[0].mxu0
    %1133 = vdwg.mxu0
    %v1134 = vadd.f32 %v1061, %v1131
    %v1135 = vxor.u32 %v1134, 2147483648
    %v1136 = vmul.f32 %v1135, 1.442695
    %v1137 = vpow.pop %v1136
    %v1138 = vadd.f32 %v1137, 1.0
    %v1139 = vrcp.pop %v1138
    %v1140 = vmul.f32 1.0, %v1139
    %1142 = vrot.lane.b32.xlu0 %v1131, 64
    %v1143 = vpop.permute.xlu0 %1142
    %v1145 = vmul.f32 %v1140, %v1143
    %1147 = vrot.lane.b32.xlu0 %v1145, 64
    %v1148 = vpop.permute.xlu0 %1147
    %v1150 = vadd.f32 %v1061, %v1148
    %v1151 = vtanh.pop %v1150
    %v1152 = vsub.f32 %v1055, %v1151
    %1154 = vrot.lane.b32.xlu0 %v1152, 96
    %v1155 = vpop.permute.xlu0 %1154
    %v1157 = vmul.f32 %v1140, %v1155
    %1159 = vrot.lane.b32.xlu0 %v1157, 32
    %v1160 = vpop.permute.xlu0 %1159
    %v1162 = vadd.f32 %v1151, %v1160
    %1164 = vrot.lane.b32.xlu0 %v1162, 64
    %v1165 = vpop.permute.xlu0 %1164
    %1167 = vst.msk [vmem:[#allocation3 + $0xe] sm:$0x3] %vm417, %v1165
    %1168 = vst.msk [vmem:[#allocation12] sm:$0x3] %vm417, %v1165
    %v1169 = vld [vmem:[#allocation3] sm:$0xff]
    %v1170 = vld [vmem:[#allocation3 + $0x8] sm:$0xff]
    %v1171 = vld [vmem:[#allocation10] sm:$0xff]
    %v1172 = vld [vmem:[#allocation10 + $0x8] sm:$0xff]
    %v1173 = vld [vmem:[#allocation10 + $0x10] sm:$0xff]
    %v1174 = vld [vmem:[#allocation10 + $0x18] sm:$0xff]
    %v1175 = vld [vmem:[%s11] sm:$0x1]
    %v1176 = vld [vmem:[%s8] sm:$0xff]
    %v1177 = vld [vmem:[%s8 + $0x8] sm:$0xff]
    %v1178 = vld [vmem:[%s8 + $0x10] sm:$0xff]
    %v1179 = vld [vmem:[%s8 + $0x18] sm:$0xff]
    %v1180 = vld [vmem:[%s10] sm:$0x1]
    %v1182 = vlaneseq
    %v1183 = vshrl.u32 %v1182, 7
    %v1184 = vsub.s32 0, %v1183
    %v1185 = vrot.slane %v1180, %v1184
    %v1188 = vsel %vm306, %v1169, 0
    %v1191 = vsel %vm306, %v1170, 0
    %1193 = vmatprep.subr.mxu0 0.0
    %1194 = vmatpush1.msra.mxu0 %v1176
    %1195 = vmatprep.subr.mxu0 0.0
    %1196 = vmatpush1.msra.mxu0 %v1177
    %1197 = vmatprep.subr.mxu0 0.0
    %1198 = vmatpush1.msra.mxu0 %v1178
    %1199 = vmatprep.subr.mxu0 0.0
    %1200 = vmatpush1.msra.mxu0 %v1179
    %1201 = vmatprep.subr.mxu0 0.0
    %1202 = vmatpush1.msra.mxu0 0.0
    %1203 = vmatprep.subr.mxu0 0.0
    %1204 = vmatpush1.msra.mxu0 0.0
    %1205 = vmatprep.subr.mxu0 0.0
    %1206 = vmatpush1.msra.mxu0 0.0
    %1207 = vmatprep.subr.mxu0 0.0
    %1208 = vmatpush1.msra.mxu0 0.0
    %1209 = vmatprep.subr.mxu0 0.0
    %1210 = vmatpush1.msra.mxu0 0.0
    %1211 = vmatprep.subr.mxu0 0.0
    %1212 = vmatpush1.msra.mxu0 0.0
    %1213 = vmatprep.subr.mxu0 0.0
    %1214 = vmatpush1.msra.mxu0 0.0
    %1215 = vmatprep.subr.mxu0 0.0
    %1216 = vmatpush1.msra.mxu0 0.0
    %1217 = vmatprep.subr.mxu0 0.0
    %1218 = vmatpush1.msra.mxu0 0.0
    %1219 = vmatprep.subr.mxu0 0.0
    %1220 = vmatpush1.msra.mxu0 0.0
    %1221 = vmatprep.subr.mxu0 0.0
    %1222 = vmatpush1.msra.mxu0 0.0
    %1223 = vmatprep.subr.mxu0 0.0
    %1224 = vmatpush1.msra.mxu0 0.0
    %1225 = vmatprep.subr.mxu0 0.0
    %1226 = vmatpush1.msra.mxu0 0.0
    %1227 = vmatprep.subr.mxu0 0.0
    %1228 = vmatpush1.msra.mxu0 0.0
    %1229 = vmatprep.subr.mxu0 0.0
    %1230 = vmatpush1.msra.mxu0 0.0
    %1231 = vmatprep.subr.mxu0 0.0
    %1232 = vmatpush1.msra.mxu0 0.0
    %1233 = vmatprep.subr.mxu0 0.0
    %1234 = vmatpush1.msra.mxu0 0.0
    %1235 = vmatprep.subr.mxu0 0.0
    %1236 = vmatpush1.msra.mxu0 0.0
    %1237 = vmatprep.subr.mxu0 0.0
    %1238 = vmatpush1.msra.mxu0 0.0
    %1239 = vmatprep.subr.mxu0 0.0
    %1240 = vmatpush1.msra.mxu0 0.0
    %1241 = vmatprep.subr.mxu0 0.0
    %1242 = vmatpush1.msra.mxu0 0.0
    %1243 = vmatprep.subr.mxu0 0.0
    %1244 = vmatpush1.msra.mxu0 0.0
    %1245 = vmatprep.subr.mxu0 0.0
    %1246 = vmatpush1.msra.mxu0 0.0
    %1247 = vmatprep.subr.mxu0 0.0
    %1248 = vmatpush1.msra.mxu0 0.0
    %1249 = vmatprep.subr.mxu0 0.0
    %1250 = vmatpush1.msra.mxu0 0.0
    %1251 = vmatprep.subr.mxu0 0.0
    %1252 = vmatpush1.msra.mxu0 0.0
    %1253 = vmatprep.subr.mxu0 0.0
    %1254 = vmatpush1.msra.mxu0 0.0
    %1255 = vmatprep.subr.mxu0 0.0
    %1256 = vmatpush1.msra.mxu0 0.0
    %1257 = vmatprep.mubr.f32.mxu0 0.0
    %1258 = vmatmul.mubr.f32.gmra.mrb[0].mxu0 %v1188
    %v1259 = vpop.f32.mrb[0].mxu0
    %v1260 = vadd.f32 %v1185, %v1259
    %v1261 = vpop.f32.mrb[0].mxu0
    %1262 = vmatprep.mubr.f32.mxu0 0.0
    %1263 = vmatmul.mubr.f32.gmra.mrb[0].mxu0 %v1191
    %v1264 = vpop.f32.mrb[0].mxu0
    %v1265 = vadd.f32 %v1185, %v1264
    %v1266 = vpop.f32.mrb[0].mxu0
    %1267 = vdwg.mxu0
    %1268 = vst.msk [vmem:[#allocation2] sm:$0xff] %vm295, %v1260
    %1269 = vst.msk [vmem:[#allocation2 + $0x8] sm:$0xff] %vm295, %v1265
    %s1270 = scalar_lea.vmem [#allocation4], 2
    %v1271 = vld [vmem:[%s1270] sm:$0x3]
    %v1272 = vld [vmem:[#allocation2] sm:$0x3]
    %v1274 = vlaneseq
    %v1275 = vshrl.u32 %v1274, 7
    %v1276 = vsub.s32 0, %v1275
    %v1277 = vrot.slane %v1175, %v1276
    %v1280 = vsel %vm306, %v1271, 0
    %1282 = vmatprep.subr.mxu0 0.0
    %1283 = vmatpush1.msra.mxu0 %v1171
    %1284 = vmatprep.subr.mxu0 0.0
    %1285 = vmatpush1.msra.mxu0 %v1172
    %1286 = vmatprep.subr.mxu0 0.0
    %1287 = vmatpush1.msra.mxu0 %v1173
    %1288 = vmatprep.subr.mxu0 0.0
    %1289 = vmatpush1.msra.mxu0 %v1174
    %1290 = vmatprep.subr.mxu0 0.0
    %1291 = vmatpush1.msra.mxu0 0.0
    %1292 = vmatprep.subr.mxu0 0.0
    %1293 = vmatpush1.msra.mxu0 0.0
    %1294 = vmatprep.subr.mxu0 0.0
    %1295 = vmatpush1.msra.mxu0 0.0
    %1296 = vmatprep.subr.mxu0 0.0
    %1297 = vmatpush1.msra.mxu0 0.0
    %1298 = vmatprep.subr.mxu0 0.0
    %1299 = vmatpush1.msra.mxu0 0.0
    %1300 = vmatprep.subr.mxu0 0.0
    %1301 = vmatpush1.msra.mxu0 0.0
    %1302 = vmatprep.subr.mxu0 0.0
    %1303 = vmatpush1.msra.mxu0 0.0
    %1304 = vmatprep.subr.mxu0 0.0
    %1305 = vmatpush1.msra.mxu0 0.0
    %1306 = vmatprep.subr.mxu0 0.0
    %1307 = vmatpush1.msra.mxu0 0.0
    %1308 = vmatprep.subr.mxu0 0.0
    %1309 = vmatpush1.msra.mxu0 0.0
    %1310 = vmatprep.subr.mxu0 0.0
    %1311 = vmatpush1.msra.mxu0 0.0
    %1312 = vmatprep.subr.mxu0 0.0
    %1313 = vmatpush1.msra.mxu0 0.0
    %1314 = vmatprep.subr.mxu0 0.0
    %1315 = vmatpush1.msra.mxu0 0.0
    %1316 = vmatprep.subr.mxu0 0.0
    %1317 = vmatpush1.msra.mxu0 0.0
    %1318 = vmatprep.subr.mxu0 0.0
    %1319 = vmatpush1.msra.mxu0 0.0
    %1320 = vmatprep.subr.mxu0 0.0
    %1321 = vmatpush1.msra.mxu0 0.0
    %1322 = vmatprep.subr.mxu0 0.0
    %1323 = vmatpush1.msra.mxu0 0.0
    %1324 = vmatprep.subr.mxu0 0.0
    %1325 = vmatpush1.msra.mxu0 0.0
    %1326 = vmatprep.subr.mxu0 0.0
    %1327 = vmatpush1.msra.mxu0 0.0
    %1328 = vmatprep.subr.mxu0 0.0
    %1329 = vmatpush1.msra.mxu0 0.0
    %1330 = vmatprep.subr.mxu0 0.0
    %1331 = vmatpush1.msra.mxu0 0.0
    %1332 = vmatprep.subr.mxu0 0.0
    %1333 = vmatpush1.msra.mxu0 0.0
    %1334 = vmatprep.subr.mxu0 0.0
    %1335 = vmatpush1.msra.mxu0 0.0
    %1336 = vmatprep.subr.mxu0 0.0
    %1337 = vmatpush1.msra.mxu0 0.0
    %1338 = vmatprep.subr.mxu0 0.0
    %1339 = vmatpush1.msra.mxu0 0.0
    %1340 = vmatprep.subr.mxu0 0.0
    %1341 = vmatpush1.msra.mxu0 0.0
    %1342 = vmatprep.subr.mxu0 0.0
    %1343 = vmatpush1.msra.mxu0 0.0
    %1344 = vmatprep.subr.mxu0 0.0
    %1345 = vmatpush1.msra.mxu0 0.0
    %1346 = vmatprep.mubr.f32.mxu0 0.0
    %1347 = vmatmul.mubr.f32.gmra.mrb[0].mxu0 %v1280
    %v1348 = vpop.f32.mrb[0].mxu0
    %v1349 = vadd.f32 %v1277, %v1348
    %v1350 = vpop.f32.mrb[0].mxu0
    %1351 = vdwg.mxu0
    %v1352 = vadd.f32 %v1272, %v1349
    %v1353 = vxor.u32 %v1352, 2147483648
    %v1354 = vmul.f32 %v1353, 1.442695
    %v1355 = vpow.pop %v1354
    %v1356 = vadd.f32 %v1355, 1.0
    %v1357 = vrcp.pop %v1356
    %v1358 = vmul.f32 1.0, %v1357
    %1360 = vrot.lane.b32.xlu0 %v1349, 64
    %v1361 = vpop.permute.xlu0 %1360
    %v1363 = vmul.f32 %v1358, %v1361
    %1365 = vrot.lane.b32.xlu0 %v1363, 64
    %v1366 = vpop.permute.xlu0 %1365
    %v1368 = vadd.f32 %v1272, %v1366
    %v1369 = vtanh.pop %v1368
    %1371 = vrot.lane.b32.xlu0 %v1369, 64
    %v1372 = vpop.permute.xlu0 %1371
    %v1374 = vsub.f32 %v1271, %v1372
    %1376 = vrot.lane.b32.xlu0 %v1374, 32
    %v1377 = vpop.permute.xlu0 %1376
    %v1379 = vmul.f32 %v1358, %v1377
    %1381 = vrot.lane.b32.xlu0 %v1379, 32
    %v1382 = vpop.permute.xlu0 %1381
    %v1384 = vadd.f32 %v1369, %v1382
    %1386 = vrot.lane.b32.xlu0 %v1384, 64
    %v1387 = vpop.permute.xlu0 %1386
    %1389 = vst.msk [vmem:[#allocation3] sm:$0x3] %vm417, %v1387
    %v1390 = vld [vmem:[#allocation2 + $0x2] sm:$0x3]
    %v1391 = vsel %vm306, %v1387, 0
    %1393 = vmatprep.subr.mxu0 0.0
    %1394 = vmatpush1.msra.mxu0 %v1171
    %1395 = vmatprep.subr.mxu0 0.0
    %1396 = vmatpush1.msra.mxu0 %v1172
    %1397 = vmatprep.subr.mxu0 0.0
    %1398 = vmatpush1.msra.mxu0 %v1173
    %1399 = vmatprep.subr.mxu0 0.0
    %1400 = vmatpush1.msra.mxu0 %v1174
    %1401 = vmatprep.subr.mxu0 0.0
    %1402 = vmatpush1.msra.mxu0 0.0
    %1403 = vmatprep.subr.mxu0 0.0
    %1404 = vmatpush1.msra.mxu0 0.0
    %1405 = vmatprep.subr.mxu0 0.0
    %1406 = vmatpush1.msra.mxu0 0.0
    %1407 = vmatprep.subr.mxu0 0.0
    %1408 = vmatpush1.msra.mxu0 0.0
    %1409 = vmatprep.subr.mxu0 0.0
    %1410 = vmatpush1.msra.mxu0 0.0
    %1411 = vmatprep.subr.mxu0 0.0
    %1412 = vmatpush1.msra.mxu0 0.0
    %1413 = vmatprep.subr.mxu0 0.0
    %1414 = vmatpush1.msra.mxu0 0.0
    %1415 = vmatprep.subr.mxu0 0.0
    %1416 = vmatpush1.msra.mxu0 0.0
    %1417 = vmatprep.subr.mxu0 0.0
    %1418 = vmatpush1.msra.mxu0 0.0
    %1419 = vmatprep.subr.mxu0 0.0
    %1420 = vmatpush1.msra.mxu0 0.0
    %1421 = vmatprep.subr.mxu0 0.0
    %1422 = vmatpush1.msra.mxu0 0.0
    %1423 = vmatprep.subr.mxu0 0.0
    %1424 = vmatpush1.msra.mxu0 0.0
    %1425 = vmatprep.subr.mxu0 0.0
    %1426 = vmatpush1.msra.mxu0 0.0
    %1427 = vmatprep.subr.mxu0 0.0
    %1428 = vmatpush1.msra.mxu0 0.0
    %1429 = vmatprep.subr.mxu0 0.0
    %1430 = vmatpush1.msra.mxu0 0.0
    %1431 = vmatprep.subr.mxu0 0.0
    %1432 = vmatpush1.msra.mxu0 0.0
    %1433 = vmatprep.subr.mxu0 0.0
    %1434 = vmatpush1.msra.mxu0 0.0
    %1435 = vmatprep.subr.mxu0 0.0
    %1436 = vmatpush1.msra.mxu0 0.0
    %1437 = vmatprep.subr.mxu0 0.0
    %1438 = vmatpush1.msra.mxu0 0.0
    %1439 = vmatprep.subr.mxu0 0.0
    %1440 = vmatpush1.msra.mxu0 0.0
    %1441 = vmatprep.subr.mxu0 0.0
    %1442 = vmatpush1.msra.mxu0 0.0
    %1443 = vmatprep.subr.mxu0 0.0
    %1444 = vmatpush1.msra.mxu0 0.0
    %1445 = vmatprep.subr.mxu0 0.0
    %1446 = vmatpush1.msra.mxu0 0.0
    %1447 = vmatprep.subr.mxu0 0.0
    %1448 = vmatpush1.msra.mxu0 0.0
    %1449 = vmatprep.subr.mxu0 0.0
    %1450 = vmatpush1.msra.mxu0 0.0
    %1451 = vmatprep.subr.mxu0 0.0
    %1452 = vmatpush1.msra.mxu0 0.0
    %1453 = vmatprep.subr.mxu0 0.0
    %1454 = vmatpush1.msra.mxu0 0.0
    %1455 = vmatprep.subr.mxu0 0.0
    %1456 = vmatpush1.msra.mxu0 0.0
    %1457 = vmatprep.mubr.f32.mxu0 0.0
    %1458 = vmatmul.mubr.f32.gmra.mrb[0].mxu0 %v1391
    %v1459 = vpop.f32.mrb[0].mxu0
    %v1460 = vadd.f32 %v1277, %v1459
    %v1461 = vpop.f32.mrb[0].mxu0
    %1462 = vdwg.mxu0
    %v1463 = vadd.f32 %v1390, %v1460
    %v1464 = vxor.u32 %v1463, 2147483648
    %v1465 = vmul.f32 %v1464, 1.442695
    %v1466 = vpow.pop %v1465
    %v1467 = vadd.f32 %v1466, 1.0
    %v1468 = vrcp.pop %v1467
    %v1469 = vmul.f32 1.0, %v1468
    %1471 = vrot.lane.b32.xlu0 %v1460, 64
    %v1472 = vpop.permute.xlu0 %1471
    %v1474 = vmul.f32 %v1469, %v1472
    %1476 = vrot.lane.b32.xlu0 %v1474, 64
    %v1477 = vpop.permute.xlu0 %1476
    %v1479 = vadd.f32 %v1390, %v1477
    %v1480 = vtanh.pop %v1479
    %v1481 = vsub.f32 %v1384, %v1480
    %1483 = vrot.lane.b32.xlu0 %v1481, 96
    %v1484 = vpop.permute.xlu0 %1483
    %v1486 = vmul.f32 %v1469, %v1484
    %1488 = vrot.lane.b32.xlu0 %v1486, 32
    %v1489 = vpop.permute.xlu0 %1488
    %v1491 = vadd.f32 %v1480, %v1489
    %1493 = vrot.lane.b32.xlu0 %v1491, 64
    %v1494 = vpop.permute.xlu0 %1493
    %1496 = vst.msk [vmem:[#allocation3 + $0x2] sm:$0x3] %vm417, %v1494
    %v1497 = vld [vmem:[#allocation2 + $0x4] sm:$0x3]
    %v1498 = vsel %vm306, %v1494, 0
    %1500 = vmatprep.subr.mxu0 0.0
    %1501 = vmatpush1.msra.mxu0 %v1171
    %1502 = vmatprep.subr.mxu0 0.0
    %1503 = vmatpush1.msra.mxu0 %v1172
    %1504 = vmatprep.subr.mxu0 0.0
    %1505 = vmatpush1.msra.mxu0 %v1173
    %1506 = vmatprep.subr.mxu0 0.0
    %1507 = vmatpush1.msra.mxu0 %v1174
    %1508 = vmatprep.subr.mxu0 0.0
    %1509 = vmatpush1.msra.mxu0 0.0
    %1510 = vmatprep.subr.mxu0 0.0
    %1511 = vmatpush1.msra.mxu0 0.0
    %1512 = vmatprep.subr.mxu0 0.0
    %1513 = vmatpush1.msra.mxu0 0.0
    %1514 = vmatprep.subr.mxu0 0.0
    %1515 = vmatpush1.msra.mxu0 0.0
    %1516 = vmatprep.subr.mxu0 0.0
    %1517 = vmatpush1.msra.mxu0 0.0
    %1518 = vmatprep.subr.mxu0 0.0
    %1519 = vmatpush1.msra.mxu0 0.0
    %1520 = vmatprep.subr.mxu0 0.0
    %1521 = vmatpush1.msra.mxu0 0.0
    %1522 = vmatprep.subr.mxu0 0.0
    %1523 = vmatpush1.msra.mxu0 0.0
    %1524 = vmatprep.subr.mxu0 0.0
    %1525 = vmatpush1.msra.mxu0 0.0
    %1526 = vmatprep.subr.mxu0 0.0
    %1527 = vmatpush1.msra.mxu0 0.0
    %1528 = vmatprep.subr.mxu0 0.0
    %1529 = vmatpush1.msra.mxu0 0.0
    %1530 = vmatprep.subr.mxu0 0.0
    %1531 = vmatpush1.msra.mxu0 0.0
    %1532 = vmatprep.subr.mxu0 0.0
    %1533 = vmatpush1.msra.mxu0 0.0
    %1534 = vmatprep.subr.mxu0 0.0
    %1535 = vmatpush1.msra.mxu0 0.0
    %1536 = vmatprep.subr.mxu0 0.0
    %1537 = vmatpush1.msra.mxu0 0.0
    %1538 = vmatprep.subr.mxu0 0.0
    %1539 = vmatpush1.msra.mxu0 0.0
    %1540 = vmatprep.subr.mxu0 0.0
    %1541 = vmatpush1.msra.mxu0 0.0
    %1542 = vmatprep.subr.mxu0 0.0
    %1543 = vmatpush1.msra.mxu0 0.0
    %1544 = vmatprep.subr.mxu0 0.0
    %1545 = vmatpush1.msra.mxu0 0.0
    %1546 = vmatprep.subr.mxu0 0.0
    %1547 = vmatpush1.msra.mxu0 0.0
    %1548 = vmatprep.subr.mxu0 0.0
    %1549 = vmatpush1.msra.mxu0 0.0
    %1550 = vmatprep.subr.mxu0 0.0
    %1551 = vmatpush1.msra.mxu0 0.0
    %1552 = vmatprep.subr.mxu0 0.0
    %1553 = vmatpush1.msra.mxu0 0.0
    %1554 = vmatprep.subr.mxu0 0.0
    %1555 = vmatpush1.msra.mxu0 0.0
    %1556 = vmatprep.subr.mxu0 0.0
    %1557 = vmatpush1.msra.mxu0 0.0
    %1558 = vmatprep.subr.mxu0 0.0
    %1559 = vmatpush1.msra.mxu0 0.0
    %1560 = vmatprep.subr.mxu0 0.0
    %1561 = vmatpush1.msra.mxu0 0.0
    %1562 = vmatprep.subr.mxu0 0.0
    %1563 = vmatpush1.msra.mxu0 0.0
    %1564 = vmatprep.mubr.f32.mxu0 0.0
    %1565 = vmatmul.mubr.f32.gmra.mrb[0].mxu0 %v1498
    %v1566 = vpop.f32.mrb[0].mxu0
    %v1567 = vadd.f32 %v1277, %v1566
    %v1568 = vpop.f32.mrb[0].mxu0
    %1569 = vdwg.mxu0
    %v1570 = vadd.f32 %v1497, %v1567
    %v1571 = vxor.u32 %v1570, 2147483648
    %v1572 = vmul.f32 %v1571, 1.442695
    %v1573 = vpow.pop %v1572
    %v1574 = vadd.f32 %v1573, 1.0
    %v1575 = vrcp.pop %v1574
    %v1576 = vmul.f32 1.0, %v1575
    %1578 = vrot.lane.b32.xlu0 %v1567, 64
    %v1579 = vpop.permute.xlu0 %1578
    %v1581 = vmul.f32 %v1576, %v1579
    %1583 = vrot.lane.b32.xlu0 %v1581, 64
    %v1584 = vpop.permute.xlu0 %1583
    %v1586 = vadd.f32 %v1497, %v1584
    %v1587 = vtanh.pop %v1586
    %v1588 = vsub.f32 %v1491, %v1587
    %1590 = vrot.lane.b32.xlu0 %v1588, 96
    %v1591 = vpop.permute.xlu0 %1590
    %v1593 = vmul.f32 %v1576, %v1591
    %1595 = vrot.lane.b32.xlu0 %v1593, 32
    %v1596 = vpop.permute.xlu0 %1595
    %v1598 = vadd.f32 %v1587, %v1596
    %1600 = vrot.lane.b32.xlu0 %v1598, 64
    %v1601 = vpop.permute.xlu0 %1600
    %1603 = vst.msk [vmem:[#allocation3 + $0x4] sm:$0x3] %vm417, %v1601
    %v1604 = vld [vmem:[#allocation2 + $0x6] sm:$0x3]
    %v1605 = vsel %vm306, %v1601, 0
    %1607 = vmatprep.subr.mxu0 0.0
    %1608 = vmatpush1.msra.mxu0 %v1171
    %1609 = vmatprep.subr.mxu0 0.0
    %1610 = vmatpush1.msra.mxu0 %v1172
    %1611 = vmatprep.subr.mxu0 0.0
    %1612 = vmatpush1.msra.mxu0 %v1173
    %1613 = vmatprep.subr.mxu0 0.0
    %1614 = vmatpush1.msra.mxu0 %v1174
    %1615 = vmatprep.subr.mxu0 0.0
    %1616 = vmatpush1.msra.mxu0 0.0
    %1617 = vmatprep.subr.mxu0 0.0
    %1618 = vmatpush1.msra.mxu0 0.0
    %1619 = vmatprep.subr.mxu0 0.0
    %1620 = vmatpush1.msra.mxu0 0.0
    %1621 = vmatprep.subr.mxu0 0.0
    %1622 = vmatpush1.msra.mxu0 0.0
    %1623 = vmatprep.subr.mxu0 0.0
    %1624 = vmatpush1.msra.mxu0 0.0
    %1625 = vmatprep.subr.mxu0 0.0
    %1626 = vmatpush1.msra.mxu0 0.0
    %1627 = vmatprep.subr.mxu0 0.0
    %1628 = vmatpush1.msra.mxu0 0.0
    %1629 = vmatprep.subr.mxu0 0.0
    %1630 = vmatpush1.msra.mxu0 0.0
    %1631 = vmatprep.subr.mxu0 0.0
    %1632 = vmatpush1.msra.mxu0 0.0
    %1633 = vmatprep.subr.mxu0 0.0
    %1634 = vmatpush1.msra.mxu0 0.0
    %1635 = vmatprep.subr.mxu0 0.0
    %1636 = vmatpush1.msra.mxu0 0.0
    %1637 = vmatprep.subr.mxu0 0.0
    %1638 = vmatpush1.msra.mxu0 0.0
    %1639 = vmatprep.subr.mxu0 0.0
    %1640 = vmatpush1.msra.mxu0 0.0
    %1641 = vmatprep.subr.mxu0 0.0
    %1642 = vmatpush1.msra.mxu0 0.0
    %1643 = vmatprep.subr.mxu0 0.0
    %1644 = vmatpush1.msra.mxu0 0.0
    %1645 = vmatprep.subr.mxu0 0.0
    %1646 = vmatpush1.msra.mxu0 0.0
    %1647 = vmatprep.subr.mxu0 0.0
    %1648 = vmatpush1.msra.mxu0 0.0
    %1649 = vmatprep.subr.mxu0 0.0
    %1650 = vmatpush1.msra.mxu0 0.0
    %1651 = vmatprep.subr.mxu0 0.0
    %1652 = vmatpush1.msra.mxu0 0.0
    %1653 = vmatprep.subr.mxu0 0.0
    %1654 = vmatpush1.msra.mxu0 0.0
    %1655 = vmatprep.subr.mxu0 0.0
    %1656 = vmatpush1.msra.mxu0 0.0
    %1657 = vmatprep.subr.mxu0 0.0
    %1658 = vmatpush1.msra.mxu0 0.0
    %1659 = vmatprep.subr.mxu0 0.0
    %1660 = vmatpush1.msra.mxu0 0.0
    %1661 = vmatprep.subr.mxu0 0.0
    %1662 = vmatpush1.msra.mxu0 0.0
    %1663 = vmatprep.subr.mxu0 0.0
    %1664 = vmatpush1.msra.mxu0 0.0
    %1665 = vmatprep.subr.mxu0 0.0
    %1666 = vmatpush1.msra.mxu0 0.0
    %1667 = vmatprep.subr.mxu0 0.0
    %1668 = vmatpush1.msra.mxu0 0.0
    %1669 = vmatprep.subr.mxu0 0.0
    %1670 = vmatpush1.msra.mxu0 0.0
    %1671 = vmatprep.mubr.f32.mxu0 0.0
    %1672 = vmatmul.mubr.f32.gmra.mrb[0].mxu0 %v1605
    %v1673 = vpop.f32.mrb[0].mxu0
    %v1674 = vadd.f32 %v1277, %v1673
    %v1675 = vpop.f32.mrb[0].mxu0
    %1676 = vdwg.mxu0
    %v1677 = vadd.f32 %v1604, %v1674
    %v1678 = vxor.u32 %v1677, 2147483648
    %v1679 = vmul.f32 %v1678, 1.442695
    %v1680 = vpow.pop %v1679
    %v1681 = vadd.f32 %v1680, 1.0
    %v1682 = vrcp.pop %v1681
    %v1683 = vmul.f32 1.0, %v1682
    %1685 = vrot.lane.b32.xlu0 %v1674, 64
    %v1686 = vpop.permute.xlu0 %1685
    %v1688 = vmul.f32 %v1683, %v1686
    %1690 = vrot.lane.b32.xlu0 %v1688, 64
    %v1691 = vpop.permute.xlu0 %1690
    %v1693 = vadd.f32 %v1604, %v1691
    %v1694 = vtanh.pop %v1693
    %v1695 = vsub.f32 %v1598, %v1694
    %1697 = vrot.lane.b32.xlu0 %v1695, 96
    %v1698 = vpop.permute.xlu0 %1697
    %v1700 = vmul.f32 %v1683, %v1698
    %1702 = vrot.lane.b32.xlu0 %v1700, 32
    %v1703 = vpop.permute.xlu0 %1702
    %v1705 = vadd.f32 %v1694, %v1703
    %1707 = vrot.lane.b32.xlu0 %v1705, 64
    %v1708 = vpop.permute.xlu0 %1707
    %1710 = vst.msk [vmem:[#allocation3 + $0x6] sm:$0x3] %vm417, %v1708
    %v1711 = vld [vmem:[#allocation2 + $0x8] sm:$0x3]
    %v1712 = vsel %vm306, %v1708, 0
    %1714 = vmatprep.subr.mxu0 0.0
    %1715 = vmatpush1.msra.mxu0 %v1171
    %1716 = vmatprep.subr.mxu0 0.0
    %1717 = vmatpush1.msra.mxu0 %v1172
    %1718 = vmatprep.subr.mxu0 0.0
    %1719 = vmatpush1.msra.mxu0 %v1173
    %1720 = vmatprep.subr.mxu0 0.0
    %1721 = vmatpush1.msra.mxu0 %v1174
    %1722 = vmatprep.subr.mxu0 0.0
    %1723 = vmatpush1.msra.mxu0 0.0
    %1724 = vmatprep.subr.mxu0 0.0
    %1725 = vmatpush1.msra.mxu0 0.0
    %1726 = vmatprep.subr.mxu0 0.0
    %1727 = vmatpush1.msra.mxu0 0.0
    %1728 = vmatprep.subr.mxu0 0.0
    %1729 = vmatpush1.msra.mxu0 0.0
    %1730 = vmatprep.subr.mxu0 0.0
    %1731 = vmatpush1.msra.mxu0 0.0
    %1732 = vmatprep.subr.mxu0 0.0
    %1733 = vmatpush1.msra.mxu0 0.0
    %1734 = vmatprep.subr.mxu0 0.0
    %1735 = vmatpush1.msra.mxu0 0.0
    %1736 = vmatprep.subr.mxu0 0.0
    %1737 = vmatpush1.msra.mxu0 0.0
    %1738 = vmatprep.subr.mxu0 0.0
    %1739 = vmatpush1.msra.mxu0 0.0
    %1740 = vmatprep.subr.mxu0 0.0
    %1741 = vmatpush1.msra.mxu0 0.0
    %1742 = vmatprep.subr.mxu0 0.0
    %1743 = vmatpush1.msra.mxu0 0.0
    %1744 = vmatprep.subr.mxu0 0.0
    %1745 = vmatpush1.msra.mxu0 0.0
    %1746 = vmatprep.subr.mxu0 0.0
    %1747 = vmatpush1.msra.mxu0 0.0
    %1748 = vmatprep.subr.mxu0 0.0
    %1749 = vmatpush1.msra.mxu0 0.0
    %1750 = vmatprep.subr.mxu0 0.0
    %1751 = vmatpush1.msra.mxu0 0.0
    %1752 = vmatprep.subr.mxu0 0.0
    %1753 = vmatpush1.msra.mxu0 0.0
    %1754 = vmatprep.subr.mxu0 0.0
    %1755 = vmatpush1.msra.mxu0 0.0
    %1756 = vmatprep.subr.mxu0 0.0
    %1757 = vmatpush1.msra.mxu0 0.0
    %1758 = vmatprep.subr.mxu0 0.0
    %1759 = vmatpush1.msra.mxu0 0.0
    %1760 = vmatprep.subr.mxu0 0.0
    %1761 = vmatpush1.msra.mxu0 0.0
    %1762 = vmatprep.subr.mxu0 0.0
    %1763 = vmatpush1.msra.mxu0 0.0
    %1764 = vmatprep.subr.mxu0 0.0
    %1765 = vmatpush1.msra.mxu0 0.0
    %1766 = vmatprep.subr.mxu0 0.0
    %1767 = vmatpush1.msra.mxu0 0.0
    %1768 = vmatprep.subr.mxu0 0.0
    %1769 = vmatpush1.msra.mxu0 0.0
    %1770 = vmatprep.subr.mxu0 0.0
    %1771 = vmatpush1.msra.mxu0 0.0
    %1772 = vmatprep.subr.mxu0 0.0
    %1773 = vmatpush1.msra.mxu0 0.0
    %1774 = vmatprep.subr.mxu0 0.0
    %1775 = vmatpush1.msra.mxu0 0.0
    %1776 = vmatprep.subr.mxu0 0.0
    %1777 = vmatpush1.msra.mxu0 0.0
    %1778 = vmatprep.mubr.f32.mxu0 0.0
    %1779 = vmatmul.mubr.f32.gmra.mrb[0].mxu0 %v1712
    %v1780 = vpop.f32.mrb[0].mxu0
    %v1781 = vadd.f32 %v1277, %v1780
    %v1782 = vpop.f32.mrb[0].mxu0
    %1783 = vdwg.mxu0
    %v1784 = vadd.f32 %v1711, %v1781
    %v1785 = vxor.u32 %v1784, 2147483648
    %v1786 = vmul.f32 %v1785, 1.442695
    %v1787 = vpow.pop %v1786
    %v1788 = vadd.f32 %v1787, 1.0
    %v1789 = vrcp.pop %v1788
    %v1790 = vmul.f32 1.0, %v1789
    %1792 = vrot.lane.b32.xlu0 %v1781, 64
    %v1793 = vpop.permute.xlu0 %1792
    %v1795 = vmul.f32 %v1790, %v1793
    %1797 = vrot.lane.b32.xlu0 %v1795, 64
    %v1798 = vpop.permute.xlu0 %1797
    %v1800 = vadd.f32 %v1711, %v1798
    %v1801 = vtanh.pop %v1800
    %v1802 = vsub.f32 %v1705, %v1801
    %1804 = vrot.lane.b32.xlu0 %v1802, 96
    %v1805 = vpop.permute.xlu0 %1804
    %v1807 = vmul.f32 %v1790, %v1805
    %1809 = vrot.lane.b32.xlu0 %v1807, 32
    %v1810 = vpop.permute.xlu0 %1809
    %v1812 = vadd.f32 %v1801, %v1810
    %1814 = vrot.lane.b32.xlu0 %v1812, 64
    %v1815 = vpop.permute.xlu0 %1814
    %1817 = vst.msk [vmem:[#allocation3 + $0x8] sm:$0x3] %vm417, %v1815
    %v1818 = vld [vmem:[#allocation2 + $0xa] sm:$0x3]
    %v1819 = vsel %vm306, %v1815, 0
    %1821 = vmatprep.subr.mxu0 0.0
    %1822 = vmatpush1.msra.mxu0 %v1171
    %1823 = vmatprep.subr.mxu0 0.0
    %1824 = vmatpush1.msra.mxu0 %v1172
    %1825 = vmatprep.subr.mxu0 0.0
    %1826 = vmatpush1.msra.mxu0 %v1173
    %1827 = vmatprep.subr.mxu0 0.0
    %1828 = vmatpush1.msra.mxu0 %v1174
    %1829 = vmatprep.subr.mxu0 0.0
    %1830 = vmatpush1.msra.mxu0 0.0
    %1831 = vmatprep.subr.mxu0 0.0
    %1832 = vmatpush1.msra.mxu0 0.0
    %1833 = vmatprep.subr.mxu0 0.0
    %1834 = vmatpush1.msra.mxu0 0.0
    %1835 = vmatprep.subr.mxu0 0.0
    %1836 = vmatpush1.msra.mxu0 0.0
    %1837 = vmatprep.subr.mxu0 0.0
    %1838 = vmatpush1.msra.mxu0 0.0
    %1839 = vmatprep.subr.mxu0 0.0
    %1840 = vmatpush1.msra.mxu0 0.0
    %1841 = vmatprep.subr.mxu0 0.0
    %1842 = vmatpush1.msra.mxu0 0.0
    %1843 = vmatprep.subr.mxu0 0.0
    %1844 = vmatpush1.msra.mxu0 0.0
    %1845 = vmatprep.subr.mxu0 0.0
    %1846 = vmatpush1.msra.mxu0 0.0
    %1847 = vmatprep.subr.mxu0 0.0
    %1848 = vmatpush1.msra.mxu0 0.0
    %1849 = vmatprep.subr.mxu0 0.0
    %1850 = vmatpush1.msra.mxu0 0.0
    %1851 = vmatprep.subr.mxu0 0.0
    %1852 = vmatpush1.msra.mxu0 0.0
    %1853 = vmatprep.subr.mxu0 0.0
    %1854 = vmatpush1.msra.mxu0 0.0
    %1855 = vmatprep.subr.mxu0 0.0
    %1856 = vmatpush1.msra.mxu0 0.0
    %1857 = vmatprep.subr.mxu0 0.0
    %1858 = vmatpush1.msra.mxu0 0.0
    %1859 = vmatprep.subr.mxu0 0.0
    %1860 = vmatpush1.msra.mxu0 0.0
    %1861 = vmatprep.subr.mxu0 0.0
    %1862 = vmatpush1.msra.mxu0 0.0
    %1863 = vmatprep.subr.mxu0 0.0
    %1864 = vmatpush1.msra.mxu0 0.0
    %1865 = vmatprep.subr.mxu0 0.0
    %1866 = vmatpush1.msra.mxu0 0.0
    %1867 = vmatprep.subr.mxu0 0.0
    %1868 = vmatpush1.msra.mxu0 0.0
    %1869 = vmatprep.subr.mxu0 0.0
    %1870 = vmatpush1.msra.mxu0 0.0
    %1871 = vmatprep.subr.mxu0 0.0
    %1872 = vmatpush1.msra.mxu0 0.0
    %1873 = vmatprep.subr.mxu0 0.0
    %1874 = vmatpush1.msra.mxu0 0.0
    %1875 = vmatprep.subr.mxu0 0.0
    %1876 = vmatpush1.msra.mxu0 0.0
    %1877 = vmatprep.subr.mxu0 0.0
    %1878 = vmatpush1.msra.mxu0 0.0
    %1879 = vmatprep.subr.mxu0 0.0
    %1880 = vmatpush1.msra.mxu0 0.0
    %1881 = vmatprep.subr.mxu0 0.0
    %1882 = vmatpush1.msra.mxu0 0.0
    %1883 = vmatprep.subr.mxu0 0.0
    %1884 = vmatpush1.msra.mxu0 0.0
    %1885 = vmatprep.mubr.f32.mxu0 0.0
    %1886 = vmatmul.mubr.f32.gmra.mrb[0].mxu0 %v1819
    %v1887 = vpop.f32.mrb[0].mxu0
    %v1888 = vadd.f32 %v1277, %v1887
    %v1889 = vpop.f32.mrb[0].mxu0
    %1890 = vdwg.mxu0
    %v1891 = vadd.f32 %v1818, %v1888
    %v1892 = vxor.u32 %v1891, 2147483648
    %v1893 = vmul.f32 %v1892, 1.442695
    %v1894 = vpow.pop %v1893
    %v1895 = vadd.f32 %v1894, 1.0
    %v1896 = vrcp.pop %v1895
    %v1897 = vmul.f32 1.0, %v1896
    %1899 = vrot.lane.b32.xlu0 %v1888, 64
    %v1900 = vpop.permute.xlu0 %1899
    %v1902 = vmul.f32 %v1897, %v1900
    %1904 = vrot.lane.b32.xlu0 %v1902, 64
    %v1905 = vpop.permute.xlu0 %1904
    %v1907 = vadd.f32 %v1818, %v1905
    %v1908 = vtanh.pop %v1907
    %v1909 = vsub.f32 %v1812, %v1908
    %1911 = vrot.lane.b32.xlu0 %v1909, 96
    %v1912 = vpop.permute.xlu0 %1911
    %v1914 = vmul.f32 %v1897, %v1912
    %1916 = vrot.lane.b32.xlu0 %v1914, 32
    %v1917 = vpop.permute.xlu0 %1916
    %v1919 = vadd.f32 %v1908, %v1917
    %1921 = vrot.lane.b32.xlu0 %v1919, 64
    %v1922 = vpop.permute.xlu0 %1921
    %1924 = vst.msk [vmem:[#allocation3 + $0xa] sm:$0x3] %vm417, %v1922
    %v1925 = vld [vmem:[#allocation2 + $0xc] sm:$0x3]
    %v1926 = vsel %vm306, %v1922, 0
    %1928 = vmatprep.subr.mxu0 0.0
    %1929 = vmatpush1.msra.mxu0 %v1171
    %1930 = vmatprep.subr.mxu0 0.0
    %1931 = vmatpush1.msra.mxu0 %v1172
    %1932 = vmatprep.subr.mxu0 0.0
    %1933 = vmatpush1.msra.mxu0 %v1173
    %1934 = vmatprep.subr.mxu0 0.0
    %1935 = vmatpush1.msra.mxu0 %v1174
    %1936 = vmatprep.subr.mxu0 0.0
    %1937 = vmatpush1.msra.mxu0 0.0
    %1938 = vmatprep.subr.mxu0 0.0
    %1939 = vmatpush1.msra.mxu0 0.0
    %1940 = vmatprep.subr.mxu0 0.0
    %1941 = vmatpush1.msra.mxu0 0.0
    %1942 = vmatprep.subr.mxu0 0.0
    %1943 = vmatpush1.msra.mxu0 0.0
    %1944 = vmatprep.subr.mxu0 0.0
    %1945 = vmatpush1.msra.mxu0 0.0
    %1946 = vmatprep.subr.mxu0 0.0
    %1947 = vmatpush1.msra.mxu0 0.0
    %1948 = vmatprep.subr.mxu0 0.0
    %1949 = vmatpush1.msra.mxu0 0.0
    %1950 = vmatprep.subr.mxu0 0.0
    %1951 = vmatpush1.msra.mxu0 0.0
    %1952 = vmatprep.subr.mxu0 0.0
    %1953 = vmatpush1.msra.mxu0 0.0
    %1954 = vmatprep.subr.mxu0 0.0
    %1955 = vmatpush1.msra.mxu0 0.0
    %1956 = vmatprep.subr.mxu0 0.0
    %1957 = vmatpush1.msra.mxu0 0.0
    %1958 = vmatprep.subr.mxu0 0.0
    %1959 = vmatpush1.msra.mxu0 0.0
    %1960 = vmatprep.subr.mxu0 0.0
    %1961 = vmatpush1.msra.mxu0 0.0
    %1962 = vmatprep.subr.mxu0 0.0
    %1963 = vmatpush1.msra.mxu0 0.0
    %1964 = vmatprep.subr.mxu0 0.0
    %1965 = vmatpush1.msra.mxu0 0.0
    %1966 = vmatprep.subr.mxu0 0.0
    %1967 = vmatpush1.msra.mxu0 0.0
    %1968 = vmatprep.subr.mxu0 0.0
    %1969 = vmatpush1.msra.mxu0 0.0
    %1970 = vmatprep.subr.mxu0 0.0
    %1971 = vmatpush1.msra.mxu0 0.0
    %1972 = vmatprep.subr.mxu0 0.0
    %1973 = vmatpush1.msra.mxu0 0.0
    %1974 = vmatprep.subr.mxu0 0.0
    %1975 = vmatpush1.msra.mxu0 0.0
    %1976 = vmatprep.subr.mxu0 0.0
    %1977 = vmatpush1.msra.mxu0 0.0
    %1978 = vmatprep.subr.mxu0 0.0
    %1979 = vmatpush1.msra.mxu0 0.0
    %1980 = vmatprep.subr.mxu0 0.0
    %1981 = vmatpush1.msra.mxu0 0.0
    %1982 = vmatprep.subr.mxu0 0.0
    %1983 = vmatpush1.msra.mxu0 0.0
    %1984 = vmatprep.subr.mxu0 0.0
    %1985 = vmatpush1.msra.mxu0 0.0
    %1986 = vmatprep.subr.mxu0 0.0
    %1987 = vmatpush1.msra.mxu0 0.0
    %1988 = vmatprep.subr.mxu0 0.0
    %1989 = vmatpush1.msra.mxu0 0.0
    %1990 = vmatprep.subr.mxu0 0.0
    %1991 = vmatpush1.msra.mxu0 0.0
    %1992 = vmatprep.mubr.f32.mxu0 0.0
    %1993 = vmatmul.mubr.f32.gmra.mrb[0].mxu0 %v1926
    %v1994 = vpop.f32.mrb[0].mxu0
    %v1995 = vadd.f32 %v1277, %v1994
    %v1996 = vpop.f32.mrb[0].mxu0
    %1997 = vdwg.mxu0
    %v1998 = vadd.f32 %v1925, %v1995
    %v1999 = vxor.u32 %v1998, 2147483648
    %v2000 = vmul.f32 %v1999, 1.442695
    %v2001 = vpow.pop %v2000
    %v2002 = vadd.f32 %v2001, 1.0
    %v2003 = vrcp.pop %v2002
    %v2004 = vmul.f32 1.0, %v2003
    %2006 = vrot.lane.b32.xlu0 %v1995, 64
    %v2007 = vpop.permute.xlu0 %2006
    %v2009 = vmul.f32 %v2004, %v2007
    %2011 = vrot.lane.b32.xlu0 %v2009, 64
    %v2012 = vpop.permute.xlu0 %2011
    %v2014 = vadd.f32 %v1925, %v2012
    %v2015 = vtanh.pop %v2014
    %v2016 = vsub.f32 %v1919, %v2015
    %2018 = vrot.lane.b32.xlu0 %v2016, 96
    %v2019 = vpop.permute.xlu0 %2018
    %v2021 = vmul.f32 %v2004, %v2019
    %2023 = vrot.lane.b32.xlu0 %v2021, 32
    %v2024 = vpop.permute.xlu0 %2023
    %v2026 = vadd.f32 %v2015, %v2024
    %2028 = vrot.lane.b32.xlu0 %v2026, 64
    %v2029 = vpop.permute.xlu0 %2028
    %2031 = vst.msk [vmem:[#allocation3 + $0xc] sm:$0x3] %vm417, %v2029
    %v2032 = vld [vmem:[#allocation2 + $0xe] sm:$0x3]
    %v2033 = vsel %vm306, %v2029, 0
    %2035 = vmatprep.subr.mxu0 0.0
    %2036 = vmatpush1.msra.mxu0 %v1171
    %2037 = vmatprep.subr.mxu0 0.0
    %2038 = vmatpush1.msra.mxu0 %v1172
    %2039 = vmatprep.subr.mxu0 0.0
    %2040 = vmatpush1.msra.mxu0 %v1173
    %2041 = vmatprep.subr.mxu0 0.0
    %2042 = vmatpush1.msra.mxu0 %v1174
    %2043 = vmatprep.subr.mxu0 0.0
    %2044 = vmatpush1.msra.mxu0 0.0
    %2045 = vmatprep.subr.mxu0 0.0
    %2046 = vmatpush1.msra.mxu0 0.0
    %2047 = vmatprep.subr.mxu0 0.0
    %2048 = vmatpush1.msra.mxu0 0.0
    %2049 = vmatprep.subr.mxu0 0.0
    %2050 = vmatpush1.msra.mxu0 0.0
    %2051 = vmatprep.subr.mxu0 0.0
    %2052 = vmatpush1.msra.mxu0 0.0
    %2053 = vmatprep.subr.mxu0 0.0
    %2054 = vmatpush1.msra.mxu0 0.0
    %2055 = vmatprep.subr.mxu0 0.0
    %2056 = vmatpush1.msra.mxu0 0.0
    %2057 = vmatprep.subr.mxu0 0.0
    %2058 = vmatpush1.msra.mxu0 0.0
    %2059 = vmatprep.subr.mxu0 0.0
    %2060 = vmatpush1.msra.mxu0 0.0
    %2061 = vmatprep.subr.mxu0 0.0
    %2062 = vmatpush1.msra.mxu0 0.0
    %2063 = vmatprep.subr.mxu0 0.0
    %2064 = vmatpush1.msra.mxu0 0.0
    %2065 = vmatprep.subr.mxu0 0.0
    %2066 = vmatpush1.msra.mxu0 0.0
    %2067 = vmatprep.subr.mxu0 0.0
    %2068 = vmatpush1.msra.mxu0 0.0
    %2069 = vmatprep.subr.mxu0 0.0
    %2070 = vmatpush1.msra.mxu0 0.0
    %2071 = vmatprep.subr.mxu0 0.0
    %2072 = vmatpush1.msra.mxu0 0.0
    %2073 = vmatprep.subr.mxu0 0.0
    %2074 = vmatpush1.msra.mxu0 0.0
    %2075 = vmatprep.subr.mxu0 0.0
    %2076 = vmatpush1.msra.mxu0 0.0
    %2077 = vmatprep.subr.mxu0 0.0
    %2078 = vmatpush1.msra.mxu0 0.0
    %2079 = vmatprep.subr.mxu0 0.0
    %2080 = vmatpush1.msra.mxu0 0.0
    %2081 = vmatprep.subr.mxu0 0.0
    %2082 = vmatpush1.msra.mxu0 0.0
    %2083 = vmatprep.subr.mxu0 0.0
    %2084 = vmatpush1.msra.mxu0 0.0
    %2085 = vmatprep.subr.mxu0 0.0
    %2086 = vmatpush1.msra.mxu0 0.0
    %2087 = vmatprep.subr.mxu0 0.0
    %2088 = vmatpush1.msra.mxu0 0.0
    %2089 = vmatprep.subr.mxu0 0.0
    %2090 = vmatpush1.msra.mxu0 0.0
    %2091 = vmatprep.subr.mxu0 0.0
    %2092 = vmatpush1.msra.mxu0 0.0
    %2093 = vmatprep.subr.mxu0 0.0
    %2094 = vmatpush1.msra.mxu0 0.0
    %2095 = vmatprep.subr.mxu0 0.0
    %2096 = vmatpush1.msra.mxu0 0.0
    %2097 = vmatprep.subr.mxu0 0.0
    %2098 = vmatpush1.msra.mxu0 0.0
    %2099 = vmatprep.mubr.f32.mxu0 0.0
    %2100 = vmatmul.mubr.f32.gmra.mrb[0].mxu0 %v2033
    %v2101 = vpop.f32.mrb[0].mxu0
    %v2102 = vadd.f32 %v1277, %v2101
    %v2103 = vpop.f32.mrb[0].mxu0
    %2104 = vdwg.mxu0
    %v2105 = vadd.f32 %v2032, %v2102
    %v2106 = vxor.u32 %v2105, 2147483648
    %v2107 = vmul.f32 %v2106, 1.442695
    %v2108 = vpow.pop %v2107
    %v2109 = vadd.f32 %v2108, 1.0
    %v2110 = vrcp.pop %v2109
    %v2111 = vmul.f32 1.0, %v2110
    %2113 = vrot.lane.b32.xlu0 %v2102, 64
    %v2114 = vpop.permute.xlu0 %2113
    %v2116 = vmul.f32 %v2111, %v2114
    %2118 = vrot.lane.b32.xlu0 %v2116, 64
    %v2119 = vpop.permute.xlu0 %2118
    %v2121 = vadd.f32 %v2032, %v2119
    %v2122 = vtanh.pop %v2121
    %v2123 = vsub.f32 %v2026, %v2122
    %2125 = vrot.lane.b32.xlu0 %v2123, 96
    %v2126 = vpop.permute.xlu0 %2125
    %v2128 = vmul.f32 %v2111, %v2126
    %2130 = vrot.lane.b32.xlu0 %v2128, 32
    %v2131 = vpop.permute.xlu0 %2130
    %v2133 = vadd.f32 %v2122, %v2131
    %2135 = vrot.lane.b32.xlu0 %v2133, 64
    %v2136 = vpop.permute.xlu0 %2135
    %2138 = vst.msk [vmem:[#allocation3 + $0xe] sm:$0x3] %vm417, %v2136
    %s2139 = scalar_lea.vmem [#allocation12], 2
    %2140 = vst.msk [vmem:[%s2139] sm:$0x3] %vm417, %v2136
    %v2141 = vld [vmem:[#allocation3] sm:$0xff]
    %v2142 = vld [vmem:[#allocation3 + $0x8] sm:$0xff]
    %v2143 = vld [vmem:[%s12] sm:$0xff]
    %v2144 = vld [vmem:[%s12 + $0x8] sm:$0xff]
    %v2145 = vld [vmem:[%s12 + $0x10] sm:$0xff]
    %v2146 = vld [vmem:[%s12 + $0x18] sm:$0xff]
    %v2147 = vld [vmem:[%s13] sm:$0x1]
    %v2149 = vlaneseq
    %v2150 = vshrl.u32 %v2149, 7
    %v2151 = vsub.s32 0, %v2150
    %v2152 = vrot.slane %v2147, %v2151
    %v2155 = vsel %vm306, %v2141, 0
    %v2158 = vsel %vm306, %v2142, 0
    %2160 = vmatprep.subr.mxu0 0.0
    %2161 = vmatpush1.msra.mxu0 %v2143
    %2162 = vmatprep.subr.mxu0 0.0
    %2163 = vmatpush1.msra.mxu0 %v2144
    %2164 = vmatprep.subr.mxu0 0.0
    %2165 = vmatpush1.msra.mxu0 %v2145
    %2166 = vmatprep.subr.mxu0 0.0
    %2167 = vmatpush1.msra.mxu0 %v2146
    %2168 = vmatprep.subr.mxu0 0.0
    %2169 = vmatpush1.msra.mxu0 0.0
    %2170 = vmatprep.subr.mxu0 0.0
    %2171 = vmatpush1.msra.mxu0 0.0
    %2172 = vmatprep.subr.mxu0 0.0
    %2173 = vmatpush1.msra.mxu0 0.0
    %2174 = vmatprep.subr.mxu0 0.0
    %2175 = vmatpush1.msra.mxu0 0.0
    %2176 = vmatprep.subr.mxu0 0.0
    %2177 = vmatpush1.msra.mxu0 0.0
    %2178 = vmatprep.subr.mxu0 0.0
    %2179 = vmatpush1.msra.mxu0 0.0
    %2180 = vmatprep.subr.mxu0 0.0
    %2181 = vmatpush1.msra.mxu0 0.0
    %2182 = vmatprep.subr.mxu0 0.0
    %2183 = vmatpush1.msra.mxu0 0.0
    %2184 = vmatprep.subr.mxu0 0.0
    %2185 = vmatpush1.msra.mxu0 0.0
    %2186 = vmatprep.subr.mxu0 0.0
    %2187 = vmatpush1.msra.mxu0 0.0
    %2188 = vmatprep.subr.mxu0 0.0
    %2189 = vmatpush1.msra.mxu0 0.0
    %2190 = vmatprep.subr.mxu0 0.0
    %2191 = vmatpush1.msra.mxu0 0.0
    %2192 = vmatprep.subr.mxu0 0.0
    %2193 = vmatpush1.msra.mxu0 0.0
    %2194 = vmatprep.subr.mxu0 0.0
    %2195 = vmatpush1.msra.mxu0 0.0
    %2196 = vmatprep.subr.mxu0 0.0
    %2197 = vmatpush1.msra.mxu0 0.0
    %2198 = vmatprep.subr.mxu0 0.0
    %2199 = vmatpush1.msra.mxu0 0.0
    %2200 = vmatprep.subr.mxu0 0.0
    %2201 = vmatpush1.msra.mxu0 0.0
    %2202 = vmatprep.subr.mxu0 0.0
    %2203 = vmatpush1.msra.mxu0 0.0
    %2204 = vmatprep.subr.mxu0 0.0
    %2205 = vmatpush1.msra.mxu0 0.0
    %2206 = vmatprep.subr.mxu0 0.0
    %2207 = vmatpush1.msra.mxu0 0.0
    %2208 = vmatprep.subr.mxu0 0.0
    %2209 = vmatpush1.msra.mxu0 0.0
    %2210 = vmatprep.subr.mxu0 0.0
    %2211 = vmatpush1.msra.mxu0 0.0
    %2212 = vmatprep.subr.mxu0 0.0
    %2213 = vmatpush1.msra.mxu0 0.0
    %2214 = vmatprep.subr.mxu0 0.0
    %2215 = vmatpush1.msra.mxu0 0.0
    %2216 = vmatprep.subr.mxu0 0.0
    %2217 = vmatpush1.msra.mxu0 0.0
    %2218 = vmatprep.subr.mxu0 0.0
    %2219 = vmatpush1.msra.mxu0 0.0
    %2220 = vmatprep.subr.mxu0 0.0
    %2221 = vmatpush1.msra.mxu0 0.0
    %2222 = vmatprep.subr.mxu0 0.0
    %2223 = vmatpush1.msra.mxu0 0.0
    %2224 = vmatprep.mubr.f32.mxu0 0.0
    %2225 = vmatmul.mubr.f32.gmra.mrb[0].mxu0 %v2155
    %v2226 = vpop.f32.mrb[0].mxu0
    %v2227 = vadd.f32 %v2152, %v2226
    %v2228 = vpop.f32.mrb[0].mxu0
    %2229 = vmatprep.mubr.f32.mxu0 0.0
    %2230 = vmatmul.mubr.f32.gmra.mrb[0].mxu0 %v2158
    %v2231 = vpop.f32.mrb[0].mxu0
    %v2232 = vadd.f32 %v2152, %v2231
    %v2233 = vpop.f32.mrb[0].mxu0
    %2234 = vdwg.mxu0
    %2235 = vst.msk [vmem:[%s14] sm:$0xff] %vm113, %v2227
    %2236 = vst.msk [vmem:[%s14 + $0x8] sm:$0xff] %vm113, %v2232
    // Predicated region
    $region74: #{tpu_custom_call.1} parent=1 // pred_check
      _
    $region75: #{tpu_custom_call.1} parent=1 // pred_check_branch
      %2238 = sbr.rel (0) target = $region77
    $region76: #{tpu_custom_call.1} parent=1 // pred_region
      _
    $region77: #{tpu_custom_call.1} parent=1 // pred_fallthru
      _
    // Predicated region
    $region78: #{tpu_custom_call.1} parent=1 // pred_check
      _
    $region79: #{tpu_custom_call.1} parent=1 // pred_check_branch
      %2240 = sbr.rel (0) target = $region81
    $region80: #{tpu_custom_call.1} parent=1 // pred_region
      %s2242 = ssub.s32 64, 64
      %2243 = vsyncadd [#allocation6], %s2242
      %s2244 = sshll.u32 [#allocation12], 4
      %s2245 = int_to_ptr.vmem [resolvable:$true] %s2244
      %2250 = dma.vmem_to_hbm [thread:$0]  %s2245, 64, %s15, [#allocation6], 32, 32, 2
    $region81: #{tpu_custom_call.1} parent=1 // pred_fallthru
      _
    // Predicated region
    $region82: #{tpu_custom_call.1} parent=1 // pred_check
      _
    $region83: #{tpu_custom_call.1} parent=1 // pred_check_branch
      %2252 = sbr.rel (0) target = $region85
    $region84: #{tpu_custom_call.1} parent=1 // pred_region
      _
    $region85: #{tpu_custom_call.1} parent=1 // pred_fallthru
      _
    // Predicated region
    $region86: #{tpu_custom_call.1} parent=1 // pred_check
      _
    $region87: #{tpu_custom_call.1} parent=1 // pred_check_branch
      %2254 = sbr.rel (0) target = $region89
    $region88: #{tpu_custom_call.1} parent=1 // pred_region
      %2255 = dma.done [#allocation6], 64
    $region89: #{tpu_custom_call.1} parent=1 // pred_fallthru
      _
    %2256 = vsyncpa [#allocation5], 1
    %2257 = vsyncpa [#allocation8], 1
    %2258 = vsyncpa [#allocation11], 1
    %2259 = vsyncpa [#allocation6], 1

</llo_original>
